<compile_context>
chip_gen: v7x
topology: tpu7x:2x2x1
jax: 0.10.0
libtpu: 0.0.40
codegen_flags: <defaults>
</compile_context>

<pallas_src>
import functools
import math

import jax
import jax.numpy as jnp
from jax.experimental import pallas as pl
from jax.experimental.pallas import tpu as pltpu


def _vmem_limit_bytes():
    # Generation-aware budget: ~half of physical VMEM, capped at 48 MiB.
    # v5e/v6e (128 MiB physical) -> 48 MiB; v7x (64 MiB physical) -> 32 MiB.
    try:
        cap = int(pltpu.get_tpu_info().vmem_capacity_bytes)
        return int(min(48 * 1024 * 1024, cap // 2))
    except Exception:
        return 32 * 1024 * 1024


_VMEM_LIMIT = _vmem_limit_bytes()


def _round_up(n, m):
    return ((n + m - 1) // m) * m


def _pick_tile(dim, target, align):
    """Largest tile <= target that divides dim and is `align`-aligned.

    Falls back to the full dimension (always legal for a BlockSpec) if no
    aligned divisor exists.
    """
    if dim <= target:
        return dim
    t = (target // align) * align
    while t >= align:
        if dim % t == 0:
            return t
        t -= align
    return dim


# ----------------------------- tiled dense -----------------------------

def _dense_kernel(x_ref, w_ref, b_ref, o_ref, acc_ref, *, activation):
    @pl.when(pl.program_id(2) == 0)
    def _():
        acc_ref[...] = jnp.zeros_like(acc_ref)

    acc_ref[...] += jnp.dot(x_ref[...], w_ref[...],
                            preferred_element_type=jnp.float32)

    @pl.when(pl.program_id(2) == pl.num_programs(2) - 1)
    def _():
        y = acc_ref[...] + b_ref[...]
        if activation == "gelu":
            # TODO(synk): HF BERT uses exact erf GELU; tanh approx differs ~1e-3.
            c = math.sqrt(2.0 / math.pi)
            y = 0.5 * y * (1.0 + jnp.tanh(c * (y + 0.044715 * y * y * y)))
        o_ref[...] = y.astype(o_ref.dtype)


def dense(x, w, b, activation="none", out_dtype=None):
    """Tiled y = act(x @ w + b).  x:(M,K) bf16, w:(K,N) bf16, b:(N,) f32.

    Full-K / full-N weight blocks (weight DMA'd once, resident in VMEM);
    row tile up to 512. Worst-case BERT-base footprint ~22-25 MiB.
    """
    M, K = x.shape
    N = w.shape[1]
    out_dtype = out_dtype or x.dtype
    tm = _pick_tile(M, 512, 16)
    tn = _pick_tile(N, 4096, 128)
    tk = _pick_tile(K, 4096, 128)
    grid = (M // tm, N // tn, K // tk)
    return pl.pallas_call(
        functools.partial(_dense_kernel, activation=activation),
        out_shape=jax.ShapeDtypeStruct((M, N), out_dtype),
        grid=grid,
        in_specs=[
            pl.BlockSpec((tm, tk), lambda i, j, k: (i, k)),
            pl.BlockSpec((tk, tn), lambda i, j, k: (k, j)),
            pl.BlockSpec((1, tn), lambda i, j, k: (0, j)),
        ],
        out_specs=pl.BlockSpec((tm, tn), lambda i, j, k: (i, j)),
        scratch_shapes=[pltpu.VMEM((tm, tn), jnp.float32)],
        compiler_params=pltpu.CompilerParams(
            dimension_semantics=("parallel", "parallel", "arbitrary"),
            vmem_limit_bytes=_VMEM_LIMIT),
    )(x, w, b.reshape(1, N))


# ------------------ tiled dense + residual + LayerNorm fusion ------------------

def _dense_add_ln_kernel(x_ref, w_ref, b_ref, r_ref, g_ref, bb_ref,
                         o_ref, acc_ref, *, eps):
    @pl.when(pl.program_id(1) == 0)
    def _():
        acc_ref[...] = jnp.zeros_like(acc_ref)

    acc_ref[...] += jnp.dot(x_ref[...], w_ref[...],
                            preferred_element_type=jnp.float32)

    @pl.when(pl.program_id(1) == pl.num_programs(1) - 1)
    def _():
        y = acc_ref[...] + b_ref[...] + r_ref[...].astype(jnp.float32)
        mean = jnp.mean(y, axis=-1, keepdims=True)
        yc = y - mean
        var = jnp.mean(yc * yc, axis=-1, keepdims=True)
        inv = jax.lax.rsqrt(var + eps)
        o_ref[...] = (yc * inv * g_ref[...] + bb_ref[...]).astype(o_ref.dtype)


def dense_add_layernorm(x, w, b, residual, gamma, beta, eps=1e-12):
    """LayerNorm(x @ w + b + residual).  N (= hidden) kept whole per block;
    K collapsed to a single grid step so the weight/residual are touched once."""
    M, K = x.shape
    N = w.shape[1]
    tm = _pick_tile(M, 512, 16)
    tk = _pick_tile(K, 4096, 128)
    grid = (M // tm, K // tk)
    return pl.pallas_call(
        functools.partial(_dense_add_ln_kernel, eps=eps),
        out_shape=jax.ShapeDtypeStruct((M, N), residual.dtype),
        grid=grid,
        in_specs=[
            pl.BlockSpec((tm, tk), lambda i, k: (i, k)),
            pl.BlockSpec((tk, N), lambda i, k: (k, 0)),
            pl.BlockSpec((1, N), lambda i, k: (0, 0)),
            pl.BlockSpec((tm, N), lambda i, k: (i, 0)),
            pl.BlockSpec((1, N), lambda i, k: (0, 0)),
            pl.BlockSpec((1, N), lambda i, k: (0, 0)),
        ],
        out_specs=pl.BlockSpec((tm, N), lambda i, k: (i, 0)),
        scratch_shapes=[pltpu.VMEM((tm, N), jnp.float32)],
        compiler_params=pltpu.CompilerParams(
            dimension_semantics=("parallel", "arbitrary"),
            vmem_limit_bytes=_VMEM_LIMIT),
    )(x, w, b.reshape(1, N), residual, gamma.reshape(1, N), beta.reshape(1, N))


# ----------------------- embedding add + LayerNorm -----------------------

def _emb_ln_kernel(we_ref, pt_ref, g_ref, b_ref, o_ref, *, eps):
    # bf16 inputs, f32 LayerNorm statistics.
    x = we_ref[...].astype(jnp.float32) + pt_ref[...].astype(jnp.float32)
    mean = jnp.mean(x, axis=-1, keepdims=True)
    xc = x - mean
    var = jnp.mean(xc * xc, axis=-1, keepdims=True)
    inv = jax.lax.rsqrt(var + eps)
    o_ref[...] = (xc * inv * g_ref[...] + b_ref[...]).astype(o_ref.dtype)


def embed_layernorm(word_emb_rows, pos_type, gamma, beta, *, batch, seq,
                    eps=1e-12, out_dtype=jnp.bfloat16):
    M, H = word_emb_rows.shape                       # M = batch * seq
    return pl.pallas_call(
        functools.partial(_emb_ln_kernel, eps=eps),
        out_shape=jax.ShapeDtypeStruct((M, H), out_dtype),
        grid=(batch,),
        in_specs=[
            pl.BlockSpec((seq, H), lambda b: (b, 0)),
            pl.BlockSpec((seq, H), lambda b: (0, 0)),
            pl.BlockSpec((1, H), lambda b: (0, 0)),
            pl.BlockSpec((1, H), lambda b: (0, 0)),
        ],
        out_specs=pl.BlockSpec((seq, H), lambda b: (b, 0)),
        compiler_params=pltpu.CompilerParams(
            dimension_semantics=("parallel",),
            vmem_limit_bytes=_VMEM_LIMIT),
    )(word_emb_rows, pos_type, gamma.reshape(1, H), beta.reshape(1, H))


# ----------------------------- attention -----------------------------

def _attention_kernel(qkv_ref, m_ref, o_ref, *, num_heads):
    """One batch element per grid step. qkv_ref:(S, 3H) bf16 straight from the
    fused QKV projection (Q columns already pre-scaled by 1/sqrt(Dh));
    o_ref:(S, H) is the lane-dense context slab for this batch element."""
    S, H3 = qkv_ref.shape
    H = H3 // 3
    Dh = H // num_heads
    mask = m_ref[...]                                # (1, S) additive bias, f32
    # Static unroll over heads: plain 2-D MXU dots, no in-kernel head transpose.
    # TODO(synk): for long sequences switch to a flash-style KV-blocked
    # online-softmax loop; full-S scores per head are fine at BERT scale.
    for h in range(num_heads):
        q = qkv_ref[:, h * Dh:(h + 1) * Dh]                       # (S, Dh) bf16
        k = qkv_ref[:, H + h * Dh:H + (h + 1) * Dh]
        v = qkv_ref[:, 2 * H + h * Dh:2 * H + (h + 1) * Dh]
        s = jax.lax.dot_general(q, k, (((1,), (1,)), ((), ())),
                                preferred_element_type=jnp.float32)
        s = s + mask
        s = s - jnp.max(s, axis=-1, keepdims=True)
        p = jnp.exp(s)
        p = p * pl.reciprocal(jnp.sum(p, axis=-1, keepdims=True), approx=True)
        ctx = jnp.dot(p.astype(v.dtype), v, preferred_element_type=jnp.float32)
        o_ref[:, h * Dh:(h + 1) * Dh] = ctx.astype(o_ref.dtype)


def attention(qkv, mask_bias, *, batch, seq, num_heads, hidden):
    """qkv: (B*S, 3H) bf16; mask_bias: (B, 1, S) f32 additive.
    Returns (B*S, H) context — no XLA reshape/transpose needed around it."""
    M = batch * seq
    return pl.pallas_call(
        functools.partial(_attention_kernel, num_heads=num_heads),
        out_shape=jax.ShapeDtypeStruct((M, hidden), qkv.dtype),
        grid=(batch,),
        in_specs=[
            pl.BlockSpec((seq, 3 * hidden), lambda b: (b, 0)),
            pl.BlockSpec((None, 1, seq), lambda b: (b, 0, 0)),
        ],
        out_specs=pl.BlockSpec((seq, hidden), lambda b: (b, 0)),
        compiler_params=pltpu.CompilerParams(
            dimension_semantics=("parallel",),
            vmem_limit_bytes=_VMEM_LIMIT),
    )(qkv, mask_bias)


# ---------------------- fused pooler + intent head ----------------------

def _pool_intent_kernel(cls_ref, pw_ref, pb_ref, iw_ref, ib_ref, o_ref):
    pooled = jnp.tanh(jnp.dot(cls_ref[...], pw_ref[...],
                              preferred_element_type=jnp.float32) + pb_ref[...])
    logits = jnp.dot(pooled.astype(iw_ref.dtype), iw_ref[...],
                     preferred_element_type=jnp.float32) + ib_ref[...]
    o_ref[...] = logits.astype(o_ref.dtype)


def pooler_intent_head(cls, pool_w, pool_b, int_w, int_b):
    B, H = cls.shape
    Ni = int_w.shape[1]
    return pl.pallas_call(
        _pool_intent_kernel,
        out_shape=jax.ShapeDtypeStruct((B, Ni), jnp.float32),
        grid=(1,),
        in_specs=[
            pl.BlockSpec((B, H), lambda i: (0, 0)),
            pl.BlockSpec((H, H), lambda i: (0, 0)),
            pl.BlockSpec((1, H), lambda i: (0, 0)),
            pl.BlockSpec((H, Ni), lambda i: (0, 0)),
            pl.BlockSpec((1, Ni), lambda i: (0, 0)),
        ],
        out_specs=pl.BlockSpec((B, Ni), lambda i: (0, 0)),
        compiler_params=pltpu.CompilerParams(vmem_limit_bytes=_VMEM_LIMIT),
    )(cls, pool_w, pool_b.reshape(1, H), int_w, int_b.reshape(1, Ni))


# ----------------------------- parameters -----------------------------

def init_params(key, *, vocab_size, hidden, num_heads, intermediate,
                num_layers, max_pos, num_intents, num_slots):
    def nrm(k, shape):
        return 0.02 * jax.random.normal(k, shape, dtype=jnp.float32)

    ni_pad = _round_up(num_intents, 128)
    ns_pad = _round_up(num_slots, 128)
    q_scale = 1.0 / math.sqrt(hidden // num_heads)

    keys = iter(jax.random.split(key, 16 + num_layers * 8))
    params = {
        # Embedding tables stored in bf16 (gather + DMA bandwidth win);
        # LayerNorm stats are computed in f32 inside the kernel.
        "word_emb": nrm(next(keys), (vocab_size, hidden)).astype(jnp.bfloat16),
        "pos_emb":  nrm(next(keys), (max_pos, hidden)).astype(jnp.bfloat16),
        "type_emb": nrm(next(keys), (2, hidden)).astype(jnp.bfloat16),
        "emb_ln_g": jnp.ones((hidden,), jnp.float32),
        "emb_ln_b": jnp.zeros((hidden,), jnp.float32),
        "pool_w":   nrm(next(keys), (hidden, hidden)).astype(jnp.bfloat16),
        "pool_b":   jnp.zeros((hidden,), jnp.float32),
        # Classifier heads padded to a lane-dense 128-wide output; real logits
        # are the leading num_intents / num_slots columns (sliced in wrapper).
        "int_w":  jnp.pad(nrm(next(keys), (hidden, num_intents)),
                          ((0, 0), (0, ni_pad - num_intents))).astype(jnp.bfloat16),
        "int_b":  jnp.zeros((ni_pad,), jnp.float32),
        "slot_w": jnp.pad(nrm(next(keys), (hidden, num_slots)),
                          ((0, 0), (0, ns_pad - num_slots))).astype(jnp.bfloat16),
        "slot_b": jnp.zeros((ns_pad,), jnp.float32),
        "layers": [],
    }
    for _ in range(num_layers):
        # Fused Q/K/V projection: columns [0:H]=Q, [H:2H]=K, [2H:3H]=V.
        # The 1/sqrt(Dh) attention scale is folded into the Q columns (weights
        # and bias), so the attention kernel does no score scaling. A real
        # checkpoint loader must apply the same folding.
        w_qkv = nrm(next(keys), (hidden, 3 * hidden))
        w_qkv = w_qkv.at[:, :hidden].multiply(q_scale)
        b_qkv = jnp.zeros((3 * hidden,), jnp.float32)   # Q slice pre-scaled too when nonzero
        layer = {
            "w_qkv": w_qkv.astype(jnp.bfloat16),
            "b_qkv": b_qkv,
            "wo":    nrm(next(keys), (hidden, hidden)).astype(jnp.bfloat16),
            "bo":    jnp.zeros((hidden,), jnp.float32),
            "ln1_g": jnp.ones((hidden,), jnp.float32),
            "ln1_b": jnp.zeros((hidden,), jnp.float32),
            "wi":    nrm(next(keys), (hidden, intermediate)).astype(jnp.bfloat16),
            "bi":    jnp.zeros((intermediate,), jnp.float32),
            "wo2":   nrm(next(keys), (intermediate, hidden)).astype(jnp.bfloat16),
            "bo2":   jnp.zeros((hidden,), jnp.float32),
            "ln2_g": jnp.ones((hidden,), jnp.float32),
            "ln2_b": jnp.zeros((hidden,), jnp.float32),
        }
        params["layers"].append(layer)
    return params


# ----------------------------- model forward -----------------------------

def bert_joint_forward(params, input_ids, attention_mask, *,
                       num_heads, num_intents, num_slots):
    B, S = input_ids.shape
    H = params["word_emb"].shape[1]

    # ---- embeddings: bf16 gather stays in XLA; add + LayerNorm fused in Pallas ----
    # Token type is segment 0 everywhere (module forward has no token_type_ids).
    we = params["word_emb"][input_ids].reshape(B * S, H)               # bf16
    pos_type = params["pos_emb"][:S] + params["type_emb"][0][None, :]  # (S, H) bf16
    h = embed_layernorm(we, pos_type, params["emb_ln_g"], params["emb_ln_b"],
                        batch=B, seq=S)                                # bf16

    # extended attention mask bias: (1 - m) * -10000, shape (B, 1, S)
    mask_bias = ((1.0 - attention_mask.astype(jnp.float32)) * -10000.0)[:, None, :]

    for layer in params["layers"]:
        # fused QKV projection (one matmul; Q columns carry the 1/sqrt(Dh) scale)
        qkv = dense(h, layer["w_qkv"], layer["b_qkv"])          # (B*S, 3H) bf16
        # attention reads qkv / writes context directly in (B*S, ...) layout
        ctx = attention(qkv, mask_bias, batch=B, seq=S,
                        num_heads=num_heads, hidden=H)          # (B*S, H) bf16
        # output projection + residual + LayerNorm fused in one kernel
        h = dense_add_layernorm(ctx, layer["wo"], layer["bo"], h,
                                layer["ln1_g"], layer["ln1_b"])
        # feed-forward: GELU fused into the up-projection epilogue,
        # residual + LayerNorm fused into the down-projection epilogue.
        inter = dense(h, layer["wi"], layer["bi"], activation="gelu")
        h = dense_add_layernorm(inter, layer["wo2"], layer["bo2"], h,
                                layer["ln2_g"], layer["ln2_b"])

    # ---- heads (dropout == identity at inference) ----
    cls = h.reshape(B, S, H)[:, 0, :]                           # (B, H) bf16
    intent_logits = pooler_intent_head(cls, params["pool_w"], params["pool_b"],
                                       params["int_w"], params["int_b"])
    intent_logits = intent_logits[:, :num_intents]              # (B, num_intents)

    slot = dense(h, params["slot_w"], params["slot_b"],
                 out_dtype=jnp.float32)                         # (B*S, 128) lane-dense
    slot_logits = slot[:, :num_slots].reshape(B, S, num_slots)
    slot_logits = jnp.transpose(slot_logits, (0, 2, 1))         # permute(0, 2, 1)
    return intent_logits, slot_logits


# ----------------------------- main -----------------------------

if __name__ == "__main__":
    B, S = 2, 8
    VOCAB, HIDDEN, HEADS, INTER, LAYERS, MAX_POS = 128, 32, 2, 64, 2, 16
    NUM_INTENTS, NUM_SLOTS = 5, 7

    key = jax.random.PRNGKey(0)
    pkey, ikey = jax.random.split(key)

    params = init_params(pkey, vocab_size=VOCAB, hidden=HIDDEN,
                         num_heads=HEADS, intermediate=INTER,
                         num_layers=LAYERS, max_pos=MAX_POS,
                         num_intents=NUM_INTENTS, num_slots=NUM_SLOTS)

    input_ids = jax.random.randint(ikey, (B, S), 0, VOCAB, dtype=jnp.int32)
    attention_mask = jnp.ones((B, S), dtype=jnp.int32).at[1, 6:].set(0)

    fwd = jax.jit(functools.partial(bert_joint_forward, num_heads=HEADS,
                                    num_intents=NUM_INTENTS,
                                    num_slots=NUM_SLOTS))
    intent_logits, slot_logits = fwd(params, input_ids, attention_mask)
    jax.block_until_ready((intent_logits, slot_logits))

    assert intent_logits.shape == (B, NUM_INTENTS)
    assert slot_logits.shape == (B, NUM_SLOTS, S)
    assert bool(jnp.all(jnp.isfinite(intent_logits)))
    assert bool(jnp.all(jnp.isfinite(slot_logits)))
    print("KERNEL_OK")
</pallas_src>

<mosaic_0001>
module attributes {stable_mosaic.version = 11 : i64} {
  func.func @_dense_kernel(%arg0: i32, %arg1: i32, %arg2: i32, %arg3: memref<16x32xbf16, #tpu.memory_space<vmem>>, %arg4: memref<32x96xbf16, #tpu.memory_space<vmem>>, %arg5: memref<1x96xf32, #tpu.memory_space<vmem>>, %arg6: memref<16x96xbf16, #tpu.memory_space<vmem>>, %arg7: memref<16x96xf32, #tpu.memory_space<vmem>>) attributes {dimension_semantics = [#tpu.dimension_semantics<parallel>, #tpu.dimension_semantics<parallel>, #tpu.dimension_semantics<arbitrary>], iteration_bounds = array<i64: 1, 1, 1>, scalar_prefetch = 0 : i64, scratch_operands = 1 : i64, tpu.core_type = #tpu.core_type<tc>, window_params = [{transform_indices = @transform_0, window_bounds = array<i64: 16, 32>}, {transform_indices = @transform_1, window_bounds = array<i64: 32, 96>}, {transform_indices = @transform_2, window_bounds = array<i64: 1, 96>}, {transform_indices = @transform_3, window_bounds = array<i64: 16, 96>}]} {
    %c0_i32 = arith.constant 0 : i32
    %0 = arith.cmpi eq, %arg2, %c0_i32 : i32
    %1 = arith.extui %0 : i1 to i32
    %c0_i32_0 = arith.constant 0 : i32
    %2 = arith.cmpi ne, %1, %c0_i32_0 : i32
    scf.if %2 {
      %cst_10 = arith.constant 0.000000e+00 : f32
      %12 = vector.broadcast %cst_10 : f32 to vector<16x96xf32>
      %c0_11 = arith.constant 0 : index
      %c0_12 = arith.constant 0 : index
      %13 = vector.load %arg7[%c0_11, %c0_12] : memref<16x96xf32, #tpu.memory_space<vmem>>, vector<16x96xf32>
      tpu.vector_store %arg7[%c0_11, %c0_12], %12 {strides = array<i32>} : memref<16x96xf32, #tpu.memory_space<vmem>>, vector<16x96xf32>,
    } else {
    }
    %c0 = arith.constant 0 : index
    %c0_1 = arith.constant 0 : index
    %3 = vector.load %arg7[%c0, %c0_1] : memref<16x96xf32, #tpu.memory_space<vmem>>, vector<16x96xf32>
    %c0_2 = arith.constant 0 : index
    %c0_3 = arith.constant 0 : index
    %4 = vector.load %arg3[%c0_2, %c0_3] : memref<16x32xbf16, #tpu.memory_space<vmem>>, vector<16x32xbf16>
    %c0_4 = arith.constant 0 : index
    %c0_5 = arith.constant 0 : index
    %5 = vector.load %arg4[%c0_4, %c0_5] : memref<32x96xbf16, #tpu.memory_space<vmem>>, vector<32x96xbf16>
    %cst = arith.constant dense<0.000000e+00> : vector<16x96xf32>
    %6 = tpu.matmul %4, %5, %cst {dimension_numbers = #tpu.dot_dimension_numbers<[1], [0], [0], [1], [0, 0, 1, 1], [], []>} : vector<16x32xbf16>, vector<32x96xbf16>, vector<16x96xf32> -> vector<16x96xf32>
    %7 = arith.addf %3, %6 : vector<16x96xf32>
    %c0_6 = arith.constant 0 : index
    %c0_7 = arith.constant 0 : index
    %8 = vector.load %arg7[%c0_6, %c0_7] : memref<16x96xf32, #tpu.memory_space<vmem>>, vector<16x96xf32>
    tpu.vector_store %arg7[%c0_6, %c0_7], %7 {strides = array<i32>} : memref<16x96xf32, #tpu.memory_space<vmem>>, vector<16x96xf32>,
    %c0_i32_8 = arith.constant 0 : i32
    %9 = arith.cmpi eq, %arg2, %c0_i32_8 : i32
    %10 = arith.extui %9 : i1 to i32
    %c0_i32_9 = arith.constant 0 : i32
    %11 = arith.cmpi ne, %10, %c0_i32_9 : i32
    scf.if %11 {
      %c0_10 = arith.constant 0 : index
      %c0_11 = arith.constant 0 : index
      %12 = vector.load %arg7[%c0_10, %c0_11] : memref<16x96xf32, #tpu.memory_space<vmem>>, vector<16x96xf32>
      %c0_12 = arith.constant 0 : index
      %c0_13 = arith.constant 0 : index
      %13 = vector.load %arg5[%c0_12, %c0_13] : memref<1x96xf32, #tpu.memory_space<vmem>>, vector<1x96xf32>
      %14 = vector.broadcast %13 : vector<1x96xf32> to vector<16x96xf32>
      %15 = arith.addf %12, %14 : vector<16x96xf32>
      %16 = arith.truncf %15 : vector<16x96xf32> to vector<16x96xbf16>
      %c0_14 = arith.constant 0 : index
      %c0_15 = arith.constant 0 : index
      %17 = vector.load %arg6[%c0_14, %c0_15] : memref<16x96xbf16, #tpu.memory_space<vmem>>, vector<16x96xbf16>
      tpu.vector_store %arg6[%c0_14, %c0_15], %16 {strides = array<i32>} : memref<16x96xbf16, #tpu.memory_space<vmem>>, vector<16x96xbf16>,
    } else {
    }
    return
  }
  func.func @transform_0(%arg0: i32, %arg1: i32, %arg2: i32) -> (i32, i32) {
    %c0_i32 = arith.constant 0 : i32
    return %arg0, %arg2 : i32, i32
  }
  func.func @transform_1(%arg0: i32, %arg1: i32, %arg2: i32) -> (i32, i32) {
    %c0_i32 = arith.constant 0 : i32
    return %arg2, %arg1 : i32, i32
  }
  func.func @transform_2(%arg0: i32, %arg1: i32, %arg2: i32) -> (i32, i32) {
    %c0_i32 = arith.constant 0 : i32
    %c0_i32_0 = arith.constant 0 : i32
    return %c0_i32, %arg1 : i32, i32
  }
  func.func @transform_3(%arg0: i32, %arg1: i32, %arg2: i32) -> (i32, i32) {
    %c0_i32 = arith.constant 0 : i32
    return %arg0, %arg1 : i32, i32
  }
}

module attributes {stable_mosaic.version = 11 : i64} {
  func.func @_emb_ln_kernel(%arg0: i32, %arg1: memref<8x32xbf16, #tpu.memory_space<vmem>>, %arg2: memref<8x32xbf16, #tpu.memory_space<vmem>>, %arg3: memref<1x32xf32, #tpu.memory_space<vmem>>, %arg4: memref<1x32xf32, #tpu.memory_space<vmem>>, %arg5: memref<8x32xbf16, #tpu.memory_space<vmem>>) attributes {dimension_semantics = [#tpu.dimension_semantics<parallel>], iteration_bounds = array<i64: 2>, scalar_prefetch = 0 : i64, scratch_operands = 0 : i64, tpu.core_type = #tpu.core_type<tc>, window_params = [{transform_indices = @transform_0, window_bounds = array<i64: 8, 32>}, {pipeline_mode = #tpu.pipeline_mode<synchronous>, transform_indices = @transform_1, window_bounds = array<i64: 8, 32>}, {pipeline_mode = #tpu.pipeline_mode<synchronous>, transform_indices = @transform_2, window_bounds = array<i64: 1, 32>}, {pipeline_mode = #tpu.pipeline_mode<synchronous>, transform_indices = @transform_3, window_bounds = array<i64: 1, 32>}, {transform_indices = @transform_4, window_bounds = array<i64: 8, 32>}]} {
    %c0 = arith.constant 0 : index
    %c0_0 = arith.constant 0 : index
    %0 = vector.load %arg1[%c0, %c0_0] : memref<8x32xbf16, #tpu.memory_space<vmem>>, vector<8x32xbf16>
    %1 = arith.extf %0 : vector<8x32xbf16> to vector<8x32xf32>
    %c0_1 = arith.constant 0 : index
    %c0_2 = arith.constant 0 : index
    %2 = vector.load %arg2[%c0_1, %c0_2] : memref<8x32xbf16, #tpu.memory_space<vmem>>, vector<8x32xbf16>
    %3 = arith.extf %2 : vector<8x32xbf16> to vector<8x32xf32>
    %4 = arith.addf %1, %3 : vector<8x32xf32>
    %cst = arith.constant dense<0.000000e+00> : vector<8xf32>
    %5 = vector.multi_reduction <add>, %4, %cst [1] : vector<8x32xf32> to vector<8xf32>
    %6 = vector.shape_cast %5 : vector<8xf32> to vector<8x1xf32>
    %cst_3 = arith.constant 3.200000e+01 : f32
    %7 = vector.broadcast %cst_3 : f32 to vector<8x1xf32>
    %8 = arith.divf %6, %7 : vector<8x1xf32>
    %9 = vector.broadcast %8 : vector<8x1xf32> to vector<8x32xf32>
    %10 = arith.subf %4, %9 : vector<8x32xf32>
    %11 = arith.mulf %10, %10 : vector<8x32xf32>
    %cst_4 = arith.constant dense<0.000000e+00> : vector<8xf32>
    %12 = vector.multi_reduction <add>, %11, %cst_4 [1] : vector<8x32xf32> to vector<8xf32>
    %13 = vector.shape_cast %12 : vector<8xf32> to vector<8x1xf32>
    %cst_5 = arith.constant 3.200000e+01 : f32
    %14 = vector.broadcast %cst_5 : f32 to vector<8x1xf32>
    %15 = arith.divf %13, %14 : vector<8x1xf32>
    %cst_6 = arith.constant 9.99999996E-13 : f32
    %16 = vector.broadcast %cst_6 : f32 to vector<8x1xf32>
    %17 = arith.addf %15, %16 : vector<8x1xf32>
    %18 = math.rsqrt %17 : vector<8x1xf32>
    %19 = vector.broadcast %18 : vector<8x1xf32> to vector<8x32xf32>
    %20 = arith.mulf %10, %19 : vector<8x32xf32>
    %c0_7 = arith.constant 0 : index
    %c0_8 = arith.constant 0 : index
    %21 = vector.load %arg3[%c0_7, %c0_8] : memref<1x32xf32, #tpu.memory_space<vmem>>, vector<1x32xf32>
    %22 = vector.broadcast %21 : vector<1x32xf32> to vector<8x32xf32>
    %23 = arith.mulf %20, %22 : vector<8x32xf32>
    %c0_9 = arith.constant 0 : index
    %c0_10 = arith.constant 0 : index
    %24 = vector.load %arg4[%c0_9, %c0_10] : memref<1x32xf32, #tpu.memory_space<vmem>>, vector<1x32xf32>
    %25 = vector.broadcast %24 : vector<1x32xf32> to vector<8x32xf32>
    %26 = arith.addf %23, %25 : vector<8x32xf32>
    %27 = arith.truncf %26 : vector<8x32xf32> to vector<8x32xbf16>
    %c0_11 = arith.constant 0 : index
    %c0_12 = arith.constant 0 : index
    %28 = vector.load %arg5[%c0_11, %c0_12] : memref<8x32xbf16, #tpu.memory_space<vmem>>, vector<8x32xbf16>
    tpu.vector_store %arg5[%c0_11, %c0_12], %27 {strides = array<i32>} : memref<8x32xbf16, #tpu.memory_space<vmem>>, vector<8x32xbf16>,
    return
  }
  func.func @transform_0(%arg0: i32) -> (i32, i32) {
    %c0_i32 = arith.constant 0 : i32
    %c0_i32_0 = arith.constant 0 : i32
    return %arg0, %c0_i32 : i32, i32
  }
  func.func @transform_1(%arg0: i32) -> (i32, i32) {
    %c0_i32 = arith.constant 0 : i32
    %c0_i32_0 = arith.constant 0 : i32
    %c0_i32_1 = arith.constant 0 : i32
    return %c0_i32, %c0_i32_0 : i32, i32
  }
  func.func @transform_2(%arg0: i32) -> (i32, i32) {
    %c0_i32 = arith.constant 0 : i32
    %c0_i32_0 = arith.constant 0 : i32
    %c0_i32_1 = arith.constant 0 : i32
    return %c0_i32, %c0_i32_0 : i32, i32
  }
  func.func @transform_3(%arg0: i32) -> (i32, i32) {
    %c0_i32 = arith.constant 0 : i32
    %c0_i32_0 = arith.constant 0 : i32
    %c0_i32_1 = arith.constant 0 : i32
    return %c0_i32, %c0_i32_0 : i32, i32
  }
  func.func @transform_4(%arg0: i32) -> (i32, i32) {
    %c0_i32 = arith.constant 0 : i32
    %c0_i32_0 = arith.constant 0 : i32
    return %arg0, %c0_i32 : i32, i32
  }
}

module attributes {stable_mosaic.version = 11 : i64} {
  func.func @_attention_kernel(%arg0: i32, %arg1: memref<8x96xbf16, #tpu.memory_space<vmem>>, %arg2: memref<1x1x8xf32, #tpu.memory_space<vmem>>, %arg3: memref<8x32xbf16, #tpu.memory_space<vmem>>) attributes {dimension_semantics = [#tpu.dimension_semantics<parallel>], iteration_bounds = array<i64: 2>, scalar_prefetch = 0 : i64, scratch_operands = 0 : i64, tpu.core_type = #tpu.core_type<tc>, window_params = [{transform_indices = @transform_0, window_bounds = array<i64: 8, 96>}, {transform_indices = @transform_1, window_bounds = array<i64: 1, 1, 8>}, {transform_indices = @transform_2, window_bounds = array<i64: 8, 32>}]} {
    %c0 = arith.constant 0 : index
    %c0_0 = arith.constant 0 : index
    %c0_1 = arith.constant 0 : index
    %0 = vector.load %arg2[%c0, %c0_0, %c0_1] : memref<1x1x8xf32, #tpu.memory_space<vmem>>, vector<1x1x8xf32>
    %1 = vector.shape_cast %0 : vector<1x1x8xf32> to vector<1x8xf32>
    %c0_2 = arith.constant 0 : index
    %c0_3 = arith.constant 0 : index
    %2 = vector.load %arg1[%c0_2, %c0_3] : memref<8x96xbf16, #tpu.memory_space<vmem>>, vector<8x16xbf16>
    %c0_4 = arith.constant 0 : index
    %c32 = arith.constant 32 : index
    %3 = vector.load %arg1[%c0_4, %c32] : memref<8x96xbf16, #tpu.memory_space<vmem>>, vector<8x16xbf16>
    %c0_5 = arith.constant 0 : index
    %c64 = arith.constant 64 : index
    %4 = vector.load %arg1[%c0_5, %c64] : memref<8x96xbf16, #tpu.memory_space<vmem>>, vector<8x16xbf16>
    %cst = arith.constant dense<0.000000e+00> : vector<8x8xf32>
    %5 = tpu.matmul %2, %3, %cst {dimension_numbers = #tpu.dot_dimension_numbers<[1], [1], [0], [0], [0, 0, 1, 0], [], []>} : vector<8x16xbf16>, vector<8x16xbf16>, vector<8x8xf32> -> vector<8x8xf32>
    %6 = vector.broadcast %1 : vector<1x8xf32> to vector<8x8xf32>
    %7 = arith.addf %5, %6 : vector<8x8xf32>
    %cst_6 = arith.constant dense<0xFF800000> : vector<8xf32>
    %8 = vector.multi_reduction <maximumf>, %7, %cst_6 [1] : vector<8x8xf32> to vector<8xf32>
    %9 = vector.shape_cast %8 : vector<8xf32> to vector<8x1xf32>
    %10 = vector.broadcast %9 : vector<8x1xf32> to vector<8x8xf32>
    %11 = arith.subf %7, %10 : vector<8x8xf32>
    %12 = math.exp %11 : vector<8x8xf32>
    %cst_7 = arith.constant dense<0.000000e+00> : vector<8xf32>
    %13 = vector.multi_reduction <add>, %12, %cst_7 [1] : vector<8x8xf32> to vector<8xf32>
    %14 = vector.shape_cast %13 : vector<8xf32> to vector<8x1xf32>
    %15 = tpu.reciprocal %14 {approx = true} : vector<8x1xf32> -> vector<8x1xf32>
    %16 = vector.broadcast %15 : vector<8x1xf32> to vector<8x8xf32>
    %17 = arith.mulf %12, %16 : vector<8x8xf32>
    %18 = arith.truncf %17 : vector<8x8xf32> to vector<8x8xbf16>
    %cst_8 = arith.constant dense<0.000000e+00> : vector<8x16xf32>
    %19 = tpu.matmul %18, %4, %cst_8 {dimension_numbers = #tpu.dot_dimension_numbers<[1], [0], [0], [1], [0, 0, 1, 1], [], []>} : vector<8x8xbf16>, vector<8x16xbf16>, vector<8x16xf32> -> vector<8x16xf32>
    %20 = arith.truncf %19 : vector<8x16xf32> to vector<8x16xbf16>
    %c0_9 = arith.constant 0 : index
    %c0_10 = arith.constant 0 : index
    %21 = vector.load %arg3[%c0_9, %c0_10] : memref<8x32xbf16, #tpu.memory_space<vmem>>, vector<8x16xbf16>
    tpu.vector_store %arg3[%c0_9, %c0_10], %20 {strides = array<i32>} : memref<8x32xbf16, #tpu.memory_space<vmem>>, vector<8x16xbf16>,
    %c0_11 = arith.constant 0 : index
    %c16 = arith.constant 16 : index
    %22 = vector.load %arg1[%c0_11, %c16] : memref<8x96xbf16, #tpu.memory_space<vmem>>, vector<8x16xbf16>
    %c0_12 = arith.constant 0 : index
    %c48 = arith.constant 48 : index
    %23 = vector.load %arg1[%c0_12, %c48] : memref<8x96xbf16, #tpu.memory_space<vmem>>, vector<8x16xbf16>
    %c0_13 = arith.constant 0 : index
    %c80 = arith.constant 80 : index
    %24 = vector.load %arg1[%c0_13, %c80] : memref<8x96xbf16, #tpu.memory_space<vmem>>, vector<8x16xbf16>
    %cst_14 = arith.constant dense<0.000000e+00> : vector<8x8xf32>
    %25 = tpu.matmul %22, %23, %cst_14 {dimension_numbers = #tpu.dot_dimension_numbers<[1], [1], [0], [0], [0, 0, 1, 0], [], []>} : vector<8x16xbf16>, vector<8x16xbf16>, vector<8x8xf32> -> vector<8x8xf32>
    %26 = vector.broadcast %1 : vector<1x8xf32> to vector<8x8xf32>
    %27 = arith.addf %25, %26 : vector<8x8xf32>
    %cst_15 = arith.constant dense<0xFF800000> : vector<8xf32>
    %28 = vector.multi_reduction <maximumf>, %27, %cst_15 [1] : vector<8x8xf32> to vector<8xf32>
    %29 = vector.shape_cast %28 : vector<8xf32> to vector<8x1xf32>
    %30 = vector.broadcast %29 : vector<8x1xf32> to vector<8x8xf32>
    %31 = arith.subf %27, %30 : vector<8x8xf32>
    %32 = math.exp %31 : vector<8x8xf32>
    %cst_16 = arith.constant dense<0.000000e+00> : vector<8xf32>
    %33 = vector.multi_reduction <add>, %32, %cst_16 [1] : vector<8x8xf32> to vector<8xf32>
    %34 = vector.shape_cast %33 : vector<8xf32> to vector<8x1xf32>
    %35 = tpu.reciprocal %34 {approx = true} : vector<8x1xf32> -> vector<8x1xf32>
    %36 = vector.broadcast %35 : vector<8x1xf32> to vector<8x8xf32>
    %37 = arith.mulf %32, %36 : vector<8x8xf32>
    %38 = arith.truncf %37 : vector<8x8xf32> to vector<8x8xbf16>
    %cst_17 = arith.constant dense<0.000000e+00> : vector<8x16xf32>
    %39 = tpu.matmul %38, %24, %cst_17 {dimension_numbers = #tpu.dot_dimension_numbers<[1], [0], [0], [1], [0, 0, 1, 1], [], []>} : vector<8x8xbf16>, vector<8x16xbf16>, vector<8x16xf32> -> vector<8x16xf32>
    %40 = arith.truncf %39 : vector<8x16xf32> to vector<8x16xbf16>
    %c0_18 = arith.constant 0 : index
    %c16_19 = arith.constant 16 : index
    %41 = vector.load %arg3[%c0_18, %c16_19] : memref<8x32xbf16, #tpu.memory_space<vmem>>, vector<8x16xbf16>
    tpu.vector_store %arg3[%c0_18, %c16_19], %40 {strides = array<i32>} : memref<8x32xbf16, #tpu.memory_space<vmem>>, vector<8x16xbf16>,
    return
  }
  func.func @transform_0(%arg0: i32) -> (i32, i32) {
    %c0_i32 = arith.constant 0 : i32
    %c0_i32_0 = arith.constant 0 : i32
    return %arg0, %c0_i32 : i32, i32
  }
  func.func @transform_1(%arg0: i32) -> (i32, i32, i32) {
    %c0_i32 = arith.constant 0 : i32
    %c0_i32_0 = arith.constant 0 : i32
    %c0_i32_1 = arith.constant 0 : i32
    return %arg0, %c0_i32, %c0_i32_0 : i32, i32, i32
  }
  func.func @transform_2(%arg0: i32) -> (i32, i32) {
    %c0_i32 = arith.constant 0 : i32
    %c0_i32_0 = arith.constant 0 : i32
    return %arg0, %c0_i32 : i32, i32
  }
}

module attributes {stable_mosaic.version = 11 : i64} {
  func.func @_dense_add_ln_kernel(%arg0: i32, %arg1: i32, %arg2: memref<16x32xbf16, #tpu.memory_space<vmem>>, %arg3: memref<32x32xbf16, #tpu.memory_space<vmem>>, %arg4: memref<1x32xf32, #tpu.memory_space<vmem>>, %arg5: memref<16x32xbf16, #tpu.memory_space<vmem>>, %arg6: memref<1x32xf32, #tpu.memory_space<vmem>>, %arg7: memref<1x32xf32, #tpu.memory_space<vmem>>, %arg8: memref<16x32xbf16, #tpu.memory_space<vmem>>, %arg9: memref<16x32xf32, #tpu.memory_space<vmem>>) attributes {dimension_semantics = [#tpu.dimension_semantics<parallel>, #tpu.dimension_semantics<arbitrary>], iteration_bounds = array<i64: 1, 1>, scalar_prefetch = 0 : i64, scratch_operands = 1 : i64, tpu.core_type = #tpu.core_type<tc>, window_params = [{transform_indices = @transform_0, window_bounds = array<i64: 16, 32>}, {transform_indices = @transform_1, window_bounds = array<i64: 32, 32>}, {pipeline_mode = #tpu.pipeline_mode<synchronous>, transform_indices = @transform_2, window_bounds = array<i64: 1, 32>}, {transform_indices = @transform_3, window_bounds = array<i64: 16, 32>}, {pipeline_mode = #tpu.pipeline_mode<synchronous>, transform_indices = @transform_4, window_bounds = array<i64: 1, 32>}, {pipeline_mode = #tpu.pipeline_mode<synchronous>, transform_indices = @transform_5, window_bounds = array<i64: 1, 32>}, {transform_indices = @transform_6, window_bounds = array<i64: 16, 32>}]} {
    %c0_i32 = arith.constant 0 : i32
    %0 = arith.cmpi eq, %arg1, %c0_i32 : i32
    %1 = arith.extui %0 : i1 to i32
    %c0_i32_0 = arith.constant 0 : i32
    %2 = arith.cmpi ne, %1, %c0_i32_0 : i32
    scf.if %2 {
      %cst_10 = arith.constant 0.000000e+00 : f32
      %12 = vector.broadcast %cst_10 : f32 to vector<16x32xf32>
      %c0_11 = arith.constant 0 : index
      %c0_12 = arith.constant 0 : index
      %13 = vector.load %arg9[%c0_11, %c0_12] : memref<16x32xf32, #tpu.memory_space<vmem>>, vector<16x32xf32>
      tpu.vector_store %arg9[%c0_11, %c0_12], %12 {strides = array<i32>} : memref<16x32xf32, #tpu.memory_space<vmem>>, vector<16x32xf32>,
    } else {
    }
    %c0 = arith.constant 0 : index
    %c0_1 = arith.constant 0 : index
    %3 = vector.load %arg9[%c0, %c0_1] : memref<16x32xf32, #tpu.memory_space<vmem>>, vector<16x32xf32>
    %c0_2 = arith.constant 0 : index
    %c0_3 = arith.constant 0 : index
    %4 = vector.load %arg2[%c0_2, %c0_3] : memref<16x32xbf16, #tpu.memory_space<vmem>>, vector<16x32xbf16>
    %c0_4 = arith.constant 0 : index
    %c0_5 = arith.constant 0 : index
    %5 = vector.load %arg3[%c0_4, %c0_5] : memref<32x32xbf16, #tpu.memory_space<vmem>>, vector<32x32xbf16>
    %cst = arith.constant dense<0.000000e+00> : vector<16x32xf32>
    %6 = tpu.matmul %4, %5, %cst {dimension_numbers = #tpu.dot_dimension_numbers<[1], [0], [0], [1], [0, 0, 1, 1], [], []>} : vector<16x32xbf16>, vector<32x32xbf16>, vector<16x32xf32> -> vector<16x32xf32>
    %7 = arith.addf %3, %6 : vector<16x32xf32>
    %c0_6 = arith.constant 0 : index
    %c0_7 = arith.constant 0 : index
    %8 = vector.load %arg9[%c0_6, %c0_7] : memref<16x32xf32, #tpu.memory_space<vmem>>, vector<16x32xf32>
    tpu.vector_store %arg9[%c0_6, %c0_7], %7 {strides = array<i32>} : memref<16x32xf32, #tpu.memory_space<vmem>>, vector<16x32xf32>,
    %c0_i32_8 = arith.constant 0 : i32
    %9 = arith.cmpi eq, %arg1, %c0_i32_8 : i32
    %10 = arith.extui %9 : i1 to i32
    %c0_i32_9 = arith.constant 0 : i32
    %11 = arith.cmpi ne, %10, %c0_i32_9 : i32
    scf.if %11 {
      %c0_10 = arith.constant 0 : index
      %c0_11 = arith.constant 0 : index
      %12 = vector.load %arg9[%c0_10, %c0_11] : memref<16x32xf32, #tpu.memory_space<vmem>>, vector<16x32xf32>
      %c0_12 = arith.constant 0 : index
      %c0_13 = arith.constant 0 : index
      %13 = vector.load %arg4[%c0_12, %c0_13] : memref<1x32xf32, #tpu.memory_space<vmem>>, vector<1x32xf32>
      %14 = vector.broadcast %13 : vector<1x32xf32> to vector<16x32xf32>
      %15 = arith.addf %12, %14 : vector<16x32xf32>
      %c0_14 = arith.constant 0 : index
      %c0_15 = arith.constant 0 : index
      %16 = vector.load %arg5[%c0_14, %c0_15] : memref<16x32xbf16, #tpu.memory_space<vmem>>, vector<16x32xbf16>
      %17 = arith.extf %16 : vector<16x32xbf16> to vector<16x32xf32>
      %18 = arith.addf %15, %17 : vector<16x32xf32>
      %cst_16 = arith.constant dense<0.000000e+00> : vector<16xf32>
      %19 = vector.multi_reduction <add>, %18, %cst_16 [1] : vector<16x32xf32> to vector<16xf32>
      %20 = vector.shape_cast %19 : vector<16xf32> to vector<16x1xf32>
      %cst_17 = arith.constant 3.200000e+01 : f32
      %21 = vector.broadcast %cst_17 : f32 to vector<16x1xf32>
      %22 = arith.divf %20, %21 : vector<16x1xf32>
      %23 = vector.broadcast %22 : vector<16x1xf32> to vector<16x32xf32>
      %24 = arith.subf %18, %23 : vector<16x32xf32>
      %25 = arith.mulf %24, %24 : vector<16x32xf32>
      %cst_18 = arith.constant dense<0.000000e+00> : vector<16xf32>
      %26 = vector.multi_reduction <add>, %25, %cst_18 [1] : vector<16x32xf32> to vector<16xf32>
      %27 = vector.shape_cast %26 : vector<16xf32> to vector<16x1xf32>
      %cst_19 = arith.constant 3.200000e+01 : f32
      %28 = vector.broadcast %cst_19 : f32 to vector<16x1xf32>
      %29 = arith.divf %27, %28 : vector<16x1xf32>
      %cst_20 = arith.constant 9.99999996E-13 : f32
      %30 = vector.broadcast %cst_20 : f32 to vector<16x1xf32>
      %31 = arith.addf %29, %30 : vector<16x1xf32>
      %32 = math.rsqrt %31 : vector<16x1xf32>
      %33 = vector.broadcast %32 : vector<16x1xf32> to vector<16x32xf32>
      %34 = arith.mulf %24, %33 : vector<16x32xf32>
      %c0_21 = arith.constant 0 : index
      %c0_22 = arith.constant 0 : index
      %35 = vector.load %arg6[%c0_21, %c0_22] : memref<1x32xf32, #tpu.memory_space<vmem>>, vector<1x32xf32>
      %36 = vector.broadcast %35 : vector<1x32xf32> to vector<16x32xf32>
      %37 = arith.mulf %34, %36 : vector<16x32xf32>
      %c0_23 = arith.constant 0 : index
      %c0_24 = arith.constant 0 : index
      %38 = vector.load %arg7[%c0_23, %c0_24] : memref<1x32xf32, #tpu.memory_space<vmem>>, vector<1x32xf32>
      %39 = vector.broadcast %38 : vector<1x32xf32> to vector<16x32xf32>
      %40 = arith.addf %37, %39 : vector<16x32xf32>
      %41 = arith.truncf %40 : vector<16x32xf32> to vector<16x32xbf16>
      %c0_25 = arith.constant 0 : index
      %c0_26 = arith.constant 0 : index
      %42 = vector.load %arg8[%c0_25, %c0_26] : memref<16x32xbf16, #tpu.memory_space<vmem>>, vector<16x32xbf16>
      tpu.vector_store %arg8[%c0_25, %c0_26], %41 {strides = array<i32>} : memref<16x32xbf16, #tpu.memory_space<vmem>>, vector<16x32xbf16>,
    } else {
    }
    return
  }
  func.func @transform_0(%arg0: i32, %arg1: i32) -> (i32, i32) {
    %c0_i32 = arith.constant 0 : i32
    return %arg0, %arg1 : i32, i32
  }
  func.func @transform_1(%arg0: i32, %arg1: i32) -> (i32, i32) {
    %c0_i32 = arith.constant 0 : i32
    %c0_i32_0 = arith.constant 0 : i32
    return %arg1, %c0_i32 : i32, i32
  }
  func.func @transform_2(%arg0: i32, %arg1: i32) -> (i32, i32) {
    %c0_i32 = arith.constant 0 : i32
    %c0_i32_0 = arith.constant 0 : i32
    %c0_i32_1 = arith.constant 0 : i32
    return %c0_i32, %c0_i32_0 : i32, i32
  }
  func.func @transform_3(%arg0: i32, %arg1: i32) -> (i32, i32) {
    %c0_i32 = arith.constant 0 : i32
    %c0_i32_0 = arith.constant 0 : i32
    return %arg0, %c0_i32 : i32, i32
  }
  func.func @transform_4(%arg0: i32, %arg1: i32) -> (i32, i32) {
    %c0_i32 = arith.constant 0 : i32
    %c0_i32_0 = arith.constant 0 : i32
    %c0_i32_1 = arith.constant 0 : i32
    return %c0_i32, %c0_i32_0 : i32, i32
  }
  func.func @transform_5(%arg0: i32, %arg1: i32) -> (i32, i32) {
    %c0_i32 = arith.constant 0 : i32
    %c0_i32_0 = arith.constant 0 : i32
    %c0_i32_1 = arith.constant 0 : i32
    return %c0_i32, %c0_i32_0 : i32, i32
  }
  func.func @transform_6(%arg0: i32, %arg1: i32) -> (i32, i32) {
    %c0_i32 = arith.constant 0 : i32
    %c0_i32_0 = arith.constant 0 : i32
    return %arg0, %c0_i32 : i32, i32
  }
}

module attributes {stable_mosaic.version = 11 : i64} {
  func.func @_dense_kernel(%arg0: i32, %arg1: i32, %arg2: i32, %arg3: memref<16x32xbf16, #tpu.memory_space<vmem>>, %arg4: memref<32x64xbf16, #tpu.memory_space<vmem>>, %arg5: memref<1x64xf32, #tpu.memory_space<vmem>>, %arg6: memref<16x64xbf16, #tpu.memory_space<vmem>>, %arg7: memref<16x64xf32, #tpu.memory_space<vmem>>) attributes {dimension_semantics = [#tpu.dimension_semantics<parallel>, #tpu.dimension_semantics<parallel>, #tpu.dimension_semantics<arbitrary>], iteration_bounds = array<i64: 1, 1, 1>, scalar_prefetch = 0 : i64, scratch_operands = 1 : i64, tpu.core_type = #tpu.core_type<tc>, window_params = [{transform_indices = @transform_0, window_bounds = array<i64: 16, 32>}, {transform_indices = @transform_1, window_bounds = array<i64: 32, 64>}, {transform_indices = @transform_2, window_bounds = array<i64: 1, 64>}, {transform_indices = @transform_3, window_bounds = array<i64: 16, 64>}]} {
    %c0_i32 = arith.constant 0 : i32
    %0 = arith.cmpi eq, %arg2, %c0_i32 : i32
    %1 = arith.extui %0 : i1 to i32
    %c0_i32_0 = arith.constant 0 : i32
    %2 = arith.cmpi ne, %1, %c0_i32_0 : i32
    scf.if %2 {
      %cst_10 = arith.constant 0.000000e+00 : f32
      %12 = vector.broadcast %cst_10 : f32 to vector<16x64xf32>
      %c0_11 = arith.constant 0 : index
      %c0_12 = arith.constant 0 : index
      %13 = vector.load %arg7[%c0_11, %c0_12] : memref<16x64xf32, #tpu.memory_space<vmem>>, vector<16x64xf32>
      tpu.vector_store %arg7[%c0_11, %c0_12], %12 {strides = array<i32>} : memref<16x64xf32, #tpu.memory_space<vmem>>, vector<16x64xf32>,
    } else {
    }
    %c0 = arith.constant 0 : index
    %c0_1 = arith.constant 0 : index
    %3 = vector.load %arg7[%c0, %c0_1] : memref<16x64xf32, #tpu.memory_space<vmem>>, vector<16x64xf32>
    %c0_2 = arith.constant 0 : index
    %c0_3 = arith.constant 0 : index
    %4 = vector.load %arg3[%c0_2, %c0_3] : memref<16x32xbf16, #tpu.memory_space<vmem>>, vector<16x32xbf16>
    %c0_4 = arith.constant 0 : index
    %c0_5 = arith.constant 0 : index
    %5 = vector.load %arg4[%c0_4, %c0_5] : memref<32x64xbf16, #tpu.memory_space<vmem>>, vector<32x64xbf16>
    %cst = arith.constant dense<0.000000e+00> : vector<16x64xf32>
    %6 = tpu.matmul %4, %5, %cst {dimension_numbers = #tpu.dot_dimension_numbers<[1], [0], [0], [1], [0, 0, 1, 1], [], []>} : vector<16x32xbf16>, vector<32x64xbf16>, vector<16x64xf32> -> vector<16x64xf32>
    %7 = arith.addf %3, %6 : vector<16x64xf32>
    %c0_6 = arith.constant 0 : index
    %c0_7 = arith.constant 0 : index
    %8 = vector.load %arg7[%c0_6, %c0_7] : memref<16x64xf32, #tpu.memory_space<vmem>>, vector<16x64xf32>
    tpu.vector_store %arg7[%c0_6, %c0_7], %7 {strides = array<i32>} : memref<16x64xf32, #tpu.memory_space<vmem>>, vector<16x64xf32>,
    %c0_i32_8 = arith.constant 0 : i32
    %9 = arith.cmpi eq, %arg2, %c0_i32_8 : i32
    %10 = arith.extui %9 : i1 to i32
    %c0_i32_9 = arith.constant 0 : i32
    %11 = arith.cmpi ne, %10, %c0_i32_9 : i32
    scf.if %11 {
      %c0_10 = arith.constant 0 : index
      %c0_11 = arith.constant 0 : index
      %12 = vector.load %arg7[%c0_10, %c0_11] : memref<16x64xf32, #tpu.memory_space<vmem>>, vector<16x64xf32>
      %c0_12 = arith.constant 0 : index
      %c0_13 = arith.constant 0 : index
      %13 = vector.load %arg5[%c0_12, %c0_13] : memref<1x64xf32, #tpu.memory_space<vmem>>, vector<1x64xf32>
      %14 = vector.broadcast %13 : vector<1x64xf32> to vector<16x64xf32>
      %15 = arith.addf %12, %14 : vector<16x64xf32>
      %cst_14 = arith.constant 5.000000e-01 : f32
      %16 = vector.broadcast %cst_14 : f32 to vector<16x64xf32>
      %17 = arith.mulf %16, %15 : vector<16x64xf32>
      %cst_15 = arith.constant 4.471500e-02 : f32
      %18 = vector.broadcast %cst_15 : f32 to vector<16x64xf32>
      %19 = arith.mulf %18, %15 : vector<16x64xf32>
      %20 = arith.mulf %19, %15 : vector<16x64xf32>
      %21 = arith.mulf %20, %15 : vector<16x64xf32>
      %22 = arith.addf %15, %21 : vector<16x64xf32>
      %cst_16 = arith.constant 0.797884583 : f32
      %23 = vector.broadcast %cst_16 : f32 to vector<16x64xf32>
      %24 = arith.mulf %23, %22 : vector<16x64xf32>
      %25 = math.tanh %24 : vector<16x64xf32>
      %cst_17 = arith.constant 1.000000e+00 : f32
      %26 = vector.broadcast %cst_17 : f32 to vector<16x64xf32>
      %27 = arith.addf %26, %25 : vector<16x64xf32>
      %28 = arith.mulf %17, %27 : vector<16x64xf32>
      %29 = arith.truncf %28 : vector<16x64xf32> to vector<16x64xbf16>
      %c0_18 = arith.constant 0 : index
      %c0_19 = arith.constant 0 : index
      %30 = vector.load %arg6[%c0_18, %c0_19] : memref<16x64xbf16, #tpu.memory_space<vmem>>, vector<16x64xbf16>
      tpu.vector_store %arg6[%c0_18, %c0_19], %29 {strides = array<i32>} : memref<16x64xbf16, #tpu.memory_space<vmem>>, vector<16x64xbf16>,
    } else {
    }
    return
  }
  func.func @transform_0(%arg0: i32, %arg1: i32, %arg2: i32) -> (i32, i32) {
    %c0_i32 = arith.constant 0 : i32
    return %arg0, %arg2 : i32, i32
  }
  func.func @transform_1(%arg0: i32, %arg1: i32, %arg2: i32) -> (i32, i32) {
    %c0_i32 = arith.constant 0 : i32
    return %arg2, %arg1 : i32, i32
  }
  func.func @transform_2(%arg0: i32, %arg1: i32, %arg2: i32) -> (i32, i32) {
    %c0_i32 = arith.constant 0 : i32
    %c0_i32_0 = arith.constant 0 : i32
    return %c0_i32, %arg1 : i32, i32
  }
  func.func @transform_3(%arg0: i32, %arg1: i32, %arg2: i32) -> (i32, i32) {
    %c0_i32 = arith.constant 0 : i32
    return %arg0, %arg1 : i32, i32
  }
}

module attributes {stable_mosaic.version = 11 : i64} {
  func.func @_dense_add_ln_kernel(%arg0: i32, %arg1: i32, %arg2: memref<16x64xbf16, #tpu.memory_space<vmem>>, %arg3: memref<64x32xbf16, #tpu.memory_space<vmem>>, %arg4: memref<1x32xf32, #tpu.memory_space<vmem>>, %arg5: memref<16x32xbf16, #tpu.memory_space<vmem>>, %arg6: memref<1x32xf32, #tpu.memory_space<vmem>>, %arg7: memref<1x32xf32, #tpu.memory_space<vmem>>, %arg8: memref<16x32xbf16, #tpu.memory_space<vmem>>, %arg9: memref<16x32xf32, #tpu.memory_space<vmem>>) attributes {dimension_semantics = [#tpu.dimension_semantics<parallel>, #tpu.dimension_semantics<arbitrary>], iteration_bounds = array<i64: 1, 1>, scalar_prefetch = 0 : i64, scratch_operands = 1 : i64, tpu.core_type = #tpu.core_type<tc>, window_params = [{transform_indices = @transform_0, window_bounds = array<i64: 16, 64>}, {transform_indices = @transform_1, window_bounds = array<i64: 64, 32>}, {pipeline_mode = #tpu.pipeline_mode<synchronous>, transform_indices = @transform_2, window_bounds = array<i64: 1, 32>}, {transform_indices = @transform_3, window_bounds = array<i64: 16, 32>}, {pipeline_mode = #tpu.pipeline_mode<synchronous>, transform_indices = @transform_4, window_bounds = array<i64: 1, 32>}, {pipeline_mode = #tpu.pipeline_mode<synchronous>, transform_indices = @transform_5, window_bounds = array<i64: 1, 32>}, {transform_indices = @transform_6, window_bounds = array<i64: 16, 32>}]} {
    %c0_i32 = arith.constant 0 : i32
    %0 = arith.cmpi eq, %arg1, %c0_i32 : i32
    %1 = arith.extui %0 : i1 to i32
    %c0_i32_0 = arith.constant 0 : i32
    %2 = arith.cmpi ne, %1, %c0_i32_0 : i32
    scf.if %2 {
      %cst_10 = arith.constant 0.000000e+00 : f32
      %12 = vector.broadcast %cst_10 : f32 to vector<16x32xf32>
      %c0_11 = arith.constant 0 : index
      %c0_12 = arith.constant 0 : index
      %13 = vector.load %arg9[%c0_11, %c0_12] : memref<16x32xf32, #tpu.memory_space<vmem>>, vector<16x32xf32>
      tpu.vector_store %arg9[%c0_11, %c0_12], %12 {strides = array<i32>} : memref<16x32xf32, #tpu.memory_space<vmem>>, vector<16x32xf32>,
    } else {
    }
    %c0 = arith.constant 0 : index
    %c0_1 = arith.constant 0 : index
    %3 = vector.load %arg9[%c0, %c0_1] : memref<16x32xf32, #tpu.memory_space<vmem>>, vector<16x32xf32>
    %c0_2 = arith.constant 0 : index
    %c0_3 = arith.constant 0 : index
    %4 = vector.load %arg2[%c0_2, %c0_3] : memref<16x64xbf16, #tpu.memory_space<vmem>>, vector<16x64xbf16>
    %c0_4 = arith.constant 0 : index
    %c0_5 = arith.constant 0 : index
    %5 = vector.load %arg3[%c0_4, %c0_5] : memref<64x32xbf16, #tpu.memory_space<vmem>>, vector<64x32xbf16>
    %cst = arith.constant dense<0.000000e+00> : vector<16x32xf32>
    %6 = tpu.matmul %4, %5, %cst {dimension_numbers = #tpu.dot_dimension_numbers<[1], [0], [0], [1], [0, 0, 1, 1], [], []>} : vector<16x64xbf16>, vector<64x32xbf16>, vector<16x32xf32> -> vector<16x32xf32>
    %7 = arith.addf %3, %6 : vector<16x32xf32>
    %c0_6 = arith.constant 0 : index
    %c0_7 = arith.constant 0 : index
    %8 = vector.load %arg9[%c0_6, %c0_7] : memref<16x32xf32, #tpu.memory_space<vmem>>, vector<16x32xf32>
    tpu.vector_store %arg9[%c0_6, %c0_7], %7 {strides = array<i32>} : memref<16x32xf32, #tpu.memory_space<vmem>>, vector<16x32xf32>,
    %c0_i32_8 = arith.constant 0 : i32
    %9 = arith.cmpi eq, %arg1, %c0_i32_8 : i32
    %10 = arith.extui %9 : i1 to i32
    %c0_i32_9 = arith.constant 0 : i32
    %11 = arith.cmpi ne, %10, %c0_i32_9 : i32
    scf.if %11 {
      %c0_10 = arith.constant 0 : index
      %c0_11 = arith.constant 0 : index
      %12 = vector.load %arg9[%c0_10, %c0_11] : memref<16x32xf32, #tpu.memory_space<vmem>>, vector<16x32xf32>
      %c0_12 = arith.constant 0 : index
      %c0_13 = arith.constant 0 : index
      %13 = vector.load %arg4[%c0_12, %c0_13] : memref<1x32xf32, #tpu.memory_space<vmem>>, vector<1x32xf32>
      %14 = vector.broadcast %13 : vector<1x32xf32> to vector<16x32xf32>
      %15 = arith.addf %12, %14 : vector<16x32xf32>
      %c0_14 = arith.constant 0 : index
      %c0_15 = arith.constant 0 : index
      %16 = vector.load %arg5[%c0_14, %c0_15] : memref<16x32xbf16, #tpu.memory_space<vmem>>, vector<16x32xbf16>
      %17 = arith.extf %16 : vector<16x32xbf16> to vector<16x32xf32>
      %18 = arith.addf %15, %17 : vector<16x32xf32>
      %cst_16 = arith.constant dense<0.000000e+00> : vector<16xf32>
      %19 = vector.multi_reduction <add>, %18, %cst_16 [1] : vector<16x32xf32> to vector<16xf32>
      %20 = vector.shape_cast %19 : vector<16xf32> to vector<16x1xf32>
      %cst_17 = arith.constant 3.200000e+01 : f32
      %21 = vector.broadcast %cst_17 : f32 to vector<16x1xf32>
      %22 = arith.divf %20, %21 : vector<16x1xf32>
      %23 = vector.broadcast %22 : vector<16x1xf32> to vector<16x32xf32>
      %24 = arith.subf %18, %23 : vector<16x32xf32>
      %25 = arith.mulf %24, %24 : vector<16x32xf32>
      %cst_18 = arith.constant dense<0.000000e+00> : vector<16xf32>
      %26 = vector.multi_reduction <add>, %25, %cst_18 [1] : vector<16x32xf32> to vector<16xf32>
      %27 = vector.shape_cast %26 : vector<16xf32> to vector<16x1xf32>
      %cst_19 = arith.constant 3.200000e+01 : f32
      %28 = vector.broadcast %cst_19 : f32 to vector<16x1xf32>
      %29 = arith.divf %27, %28 : vector<16x1xf32>
      %cst_20 = arith.constant 9.99999996E-13 : f32
      %30 = vector.broadcast %cst_20 : f32 to vector<16x1xf32>
      %31 = arith.addf %29, %30 : vector<16x1xf32>
      %32 = math.rsqrt %31 : vector<16x1xf32>
      %33 = vector.broadcast %32 : vector<16x1xf32> to vector<16x32xf32>
      %34 = arith.mulf %24, %33 : vector<16x32xf32>
      %c0_21 = arith.constant 0 : index
      %c0_22 = arith.constant 0 : index
      %35 = vector.load %arg6[%c0_21, %c0_22] : memref<1x32xf32, #tpu.memory_space<vmem>>, vector<1x32xf32>
      %36 = vector.broadcast %35 : vector<1x32xf32> to vector<16x32xf32>
      %37 = arith.mulf %34, %36 : vector<16x32xf32>
      %c0_23 = arith.constant 0 : index
      %c0_24 = arith.constant 0 : index
      %38 = vector.load %arg7[%c0_23, %c0_24] : memref<1x32xf32, #tpu.memory_space<vmem>>, vector<1x32xf32>
      %39 = vector.broadcast %38 : vector<1x32xf32> to vector<16x32xf32>
      %40 = arith.addf %37, %39 : vector<16x32xf32>
      %41 = arith.truncf %40 : vector<16x32xf32> to vector<16x32xbf16>
      %c0_25 = arith.constant 0 : index
      %c0_26 = arith.constant 0 : index
      %42 = vector.load %arg8[%c0_25, %c0_26] : memref<16x32xbf16, #tpu.memory_space<vmem>>, vector<16x32xbf16>
      tpu.vector_store %arg8[%c0_25, %c0_26], %41 {strides = array<i32>} : memref<16x32xbf16, #tpu.memory_space<vmem>>, vector<16x32xbf16>,
    } else {
    }
    return
  }
  func.func @transform_0(%arg0: i32, %arg1: i32) -> (i32, i32) {
    %c0_i32 = arith.constant 0 : i32
    return %arg0, %arg1 : i32, i32
  }
  func.func @transform_1(%arg0: i32, %arg1: i32) -> (i32, i32) {
    %c0_i32 = arith.constant 0 : i32
    %c0_i32_0 = arith.constant 0 : i32
    return %arg1, %c0_i32 : i32, i32
  }
  func.func @transform_2(%arg0: i32, %arg1: i32) -> (i32, i32) {
    %c0_i32 = arith.constant 0 : i32
    %c0_i32_0 = arith.constant 0 : i32
    %c0_i32_1 = arith.constant 0 : i32
    return %c0_i32, %c0_i32_0 : i32, i32
  }
  func.func @transform_3(%arg0: i32, %arg1: i32) -> (i32, i32) {
    %c0_i32 = arith.constant 0 : i32
    %c0_i32_0 = arith.constant 0 : i32
    return %arg0, %c0_i32 : i32, i32
  }
  func.func @transform_4(%arg0: i32, %arg1: i32) -> (i32, i32) {
    %c0_i32 = arith.constant 0 : i32
    %c0_i32_0 = arith.constant 0 : i32
    %c0_i32_1 = arith.constant 0 : i32
    return %c0_i32, %c0_i32_0 : i32, i32
  }
  func.func @transform_5(%arg0: i32, %arg1: i32) -> (i32, i32) {
    %c0_i32 = arith.constant 0 : i32
    %c0_i32_0 = arith.constant 0 : i32
    %c0_i32_1 = arith.constant 0 : i32
    return %c0_i32, %c0_i32_0 : i32, i32
  }
  func.func @transform_6(%arg0: i32, %arg1: i32) -> (i32, i32) {
    %c0_i32 = arith.constant 0 : i32
    %c0_i32_0 = arith.constant 0 : i32
    return %arg0, %c0_i32 : i32, i32
  }
}

module attributes {stable_mosaic.version = 11 : i64} {
  func.func @_dense_kernel(%arg0: i32, %arg1: i32, %arg2: i32, %arg3: memref<16x32xbf16, #tpu.memory_space<vmem>>, %arg4: memref<32x128xbf16, #tpu.memory_space<vmem>>, %arg5: memref<1x128xf32, #tpu.memory_space<vmem>>, %arg6: memref<16x128xf32, #tpu.memory_space<vmem>>, %arg7: memref<16x128xf32, #tpu.memory_space<vmem>>) attributes {dimension_semantics = [#tpu.dimension_semantics<parallel>, #tpu.dimension_semantics<parallel>, #tpu.dimension_semantics<arbitrary>], iteration_bounds = array<i64: 1, 1, 1>, scalar_prefetch = 0 : i64, scratch_operands = 1 : i64, tpu.core_type = #tpu.core_type<tc>, window_params = [{transform_indices = @transform_0, window_bounds = array<i64: 16, 32>}, {transform_indices = @transform_1, window_bounds = array<i64: 32, 128>}, {transform_indices = @transform_2, window_bounds = array<i64: 1, 128>}, {transform_indices = @transform_3, window_bounds = array<i64: 16, 128>}]} {
    %c0_i32 = arith.constant 0 : i32
    %0 = arith.cmpi eq, %arg2, %c0_i32 : i32
    %1 = arith.extui %0 : i1 to i32
    %c0_i32_0 = arith.constant 0 : i32
    %2 = arith.cmpi ne, %1, %c0_i32_0 : i32
    scf.if %2 {
      %cst_10 = arith.constant 0.000000e+00 : f32
      %12 = vector.broadcast %cst_10 : f32 to vector<16x128xf32>
      %c0_11 = arith.constant 0 : index
      %c0_12 = arith.constant 0 : index
      %13 = vector.load %arg7[%c0_11, %c0_12] : memref<16x128xf32, #tpu.memory_space<vmem>>, vector<16x128xf32>
      tpu.vector_store %arg7[%c0_11, %c0_12], %12 {strides = array<i32>} : memref<16x128xf32, #tpu.memory_space<vmem>>, vector<16x128xf32>,
    } else {
    }
    %c0 = arith.constant 0 : index
    %c0_1 = arith.constant 0 : index
    %3 = vector.load %arg7[%c0, %c0_1] : memref<16x128xf32, #tpu.memory_space<vmem>>, vector<16x128xf32>
    %c0_2 = arith.constant 0 : index
    %c0_3 = arith.constant 0 : index
    %4 = vector.load %arg3[%c0_2, %c0_3] : memref<16x32xbf16, #tpu.memory_space<vmem>>, vector<16x32xbf16>
    %c0_4 = arith.constant 0 : index
    %c0_5 = arith.constant 0 : index
    %5 = vector.load %arg4[%c0_4, %c0_5] : memref<32x128xbf16, #tpu.memory_space<vmem>>, vector<32x128xbf16>
    %cst = arith.constant dense<0.000000e+00> : vector<16x128xf32>
    %6 = tpu.matmul %4, %5, %cst {dimension_numbers = #tpu.dot_dimension_numbers<[1], [0], [0], [1], [0, 0, 1, 1], [], []>} : vector<16x32xbf16>, vector<32x128xbf16>, vector<16x128xf32> -> vector<16x128xf32>
    %7 = arith.addf %3, %6 : vector<16x128xf32>
    %c0_6 = arith.constant 0 : index
    %c0_7 = arith.constant 0 : index
    %8 = vector.load %arg7[%c0_6, %c0_7] : memref<16x128xf32, #tpu.memory_space<vmem>>, vector<16x128xf32>
    tpu.vector_store %arg7[%c0_6, %c0_7], %7 {strides = array<i32>} : memref<16x128xf32, #tpu.memory_space<vmem>>, vector<16x128xf32>,
    %c0_i32_8 = arith.constant 0 : i32
    %9 = arith.cmpi eq, %arg2, %c0_i32_8 : i32
    %10 = arith.extui %9 : i1 to i32
    %c0_i32_9 = arith.constant 0 : i32
    %11 = arith.cmpi ne, %10, %c0_i32_9 : i32
    scf.if %11 {
      %c0_10 = arith.constant 0 : index
      %c0_11 = arith.constant 0 : index
      %12 = vector.load %arg7[%c0_10, %c0_11] : memref<16x128xf32, #tpu.memory_space<vmem>>, vector<16x128xf32>
      %c0_12 = arith.constant 0 : index
      %c0_13 = arith.constant 0 : index
      %13 = vector.load %arg5[%c0_12, %c0_13] : memref<1x128xf32, #tpu.memory_space<vmem>>, vector<1x128xf32>
      %14 = vector.broadcast %13 : vector<1x128xf32> to vector<16x128xf32>
      %15 = arith.addf %12, %14 : vector<16x128xf32>
      %c0_14 = arith.constant 0 : index
      %c0_15 = arith.constant 0 : index
      %16 = vector.load %arg6[%c0_14, %c0_15] : memref<16x128xf32, #tpu.memory_space<vmem>>, vector<16x128xf32>
      tpu.vector_store %arg6[%c0_14, %c0_15], %15 {strides = array<i32>} : memref<16x128xf32, #tpu.memory_space<vmem>>, vector<16x128xf32>,
    } else {
    }
    return
  }
  func.func @transform_0(%arg0: i32, %arg1: i32, %arg2: i32) -> (i32, i32) {
    %c0_i32 = arith.constant 0 : i32
    return %arg0, %arg2 : i32, i32
  }
  func.func @transform_1(%arg0: i32, %arg1: i32, %arg2: i32) -> (i32, i32) {
    %c0_i32 = arith.constant 0 : i32
    return %arg2, %arg1 : i32, i32
  }
  func.func @transform_2(%arg0: i32, %arg1: i32, %arg2: i32) -> (i32, i32) {
    %c0_i32 = arith.constant 0 : i32
    %c0_i32_0 = arith.constant 0 : i32
    return %c0_i32, %arg1 : i32, i32
  }
  func.func @transform_3(%arg0: i32, %arg1: i32, %arg2: i32) -> (i32, i32) {
    %c0_i32 = arith.constant 0 : i32
    return %arg0, %arg1 : i32, i32
  }
}

module attributes {stable_mosaic.version = 11 : i64} {
  func.func @_pool_intent_kernel(%arg0: i32, %arg1: memref<2x32xbf16, #tpu.memory_space<vmem>>, %arg2: memref<32x32xbf16, #tpu.memory_space<vmem>>, %arg3: memref<1x32xf32, #tpu.memory_space<vmem>>, %arg4: memref<32x128xbf16, #tpu.memory_space<vmem>>, %arg5: memref<1x128xf32, #tpu.memory_space<vmem>>, %arg6: memref<2x128xf32, #tpu.memory_space<vmem>>) attributes {dimension_semantics = [#tpu.dimension_semantics<arbitrary>], iteration_bounds = array<i64: 1>, scalar_prefetch = 0 : i64, scratch_operands = 0 : i64, tpu.core_type = #tpu.core_type<tc>, window_params = [{pipeline_mode = #tpu.pipeline_mode<synchronous>, transform_indices = @transform_0, window_bounds = array<i64: 2, 32>}, {pipeline_mode = #tpu.pipeline_mode<synchronous>, transform_indices = @transform_1, window_bounds = array<i64: 32, 32>}, {pipeline_mode = #tpu.pipeline_mode<synchronous>, transform_indices = @transform_2, window_bounds = array<i64: 1, 32>}, {pipeline_mode = #tpu.pipeline_mode<synchronous>, transform_indices = @transform_3, window_bounds = array<i64: 32, 128>}, {pipeline_mode = #tpu.pipeline_mode<synchronous>, transform_indices = @transform_4, window_bounds = array<i64: 1, 128>}, {pipeline_mode = #tpu.pipeline_mode<synchronous>, transform_indices = @transform_5, window_bounds = array<i64: 2, 128>}]} {
    %c0 = arith.constant 0 : index
    %c0_0 = arith.constant 0 : index
    %0 = vector.load %arg1[%c0, %c0_0] : memref<2x32xbf16, #tpu.memory_space<vmem>>, vector<2x32xbf16>
    %c0_1 = arith.constant 0 : index
    %c0_2 = arith.constant 0 : index
    %1 = vector.load %arg2[%c0_1, %c0_2] : memref<32x32xbf16, #tpu.memory_space<vmem>>, vector<32x32xbf16>
    %cst = arith.constant dense<0.000000e+00> : vector<2x32xf32>
    %2 = tpu.matmul %0, %1, %cst {dimension_numbers = #tpu.dot_dimension_numbers<[1], [0], [0], [1], [0, 0, 1, 1], [], []>} : vector<2x32xbf16>, vector<32x32xbf16>, vector<2x32xf32> -> vector<2x32xf32>
    %c0_3 = arith.constant 0 : index
    %c0_4 = arith.constant 0 : index
    %3 = vector.load %arg3[%c0_3, %c0_4] : memref<1x32xf32, #tpu.memory_space<vmem>>, vector<1x32xf32>
    %4 = vector.broadcast %3 : vector<1x32xf32> to vector<2x32xf32>
    %5 = arith.addf %2, %4 : vector<2x32xf32>
    %6 = math.tanh %5 : vector<2x32xf32>
    %7 = arith.truncf %6 : vector<2x32xf32> to vector<2x32xbf16>
    %c0_5 = arith.constant 0 : index
    %c0_6 = arith.constant 0 : index
    %8 = vector.load %arg4[%c0_5, %c0_6] : memref<32x128xbf16, #tpu.memory_space<vmem>>, vector<32x128xbf16>
    %cst_7 = arith.constant dense<0.000000e+00> : vector<2x128xf32>
    %9 = tpu.matmul %7, %8, %cst_7 {dimension_numbers = #tpu.dot_dimension_numbers<[1], [0], [0], [1], [0, 0, 1, 1], [], []>} : vector<2x32xbf16>, vector<32x128xbf16>, vector<2x128xf32> -> vector<2x128xf32>
    %c0_8 = arith.constant 0 : index
    %c0_9 = arith.constant 0 : index
    %10 = vector.load %arg5[%c0_8, %c0_9] : memref<1x128xf32, #tpu.memory_space<vmem>>, vector<1x128xf32>
    %11 = vector.broadcast %10 : vector<1x128xf32> to vector<2x128xf32>
    %12 = arith.addf %9, %11 : vector<2x128xf32>
    %c0_10 = arith.constant 0 : index
    %c0_11 = arith.constant 0 : index
    %13 = vector.load %arg6[%c0_10, %c0_11] : memref<2x128xf32, #tpu.memory_space<vmem>>, vector<2x128xf32>
    tpu.vector_store %arg6[%c0_10, %c0_11], %12 {strides = array<i32>} : memref<2x128xf32, #tpu.memory_space<vmem>>, vector<2x128xf32>,
    return
  }
  func.func @transform_0(%arg0: i32) -> (i32, i32) {
    %c0_i32 = arith.constant 0 : i32
    %c0_i32_0 = arith.constant 0 : i32
    %c0_i32_1 = arith.constant 0 : i32
    return %c0_i32, %c0_i32_0 : i32, i32
  }
  func.func @transform_1(%arg0: i32) -> (i32, i32) {
    %c0_i32 = arith.constant 0 : i32
    %c0_i32_0 = arith.constant 0 : i32
    %c0_i32_1 = arith.constant 0 : i32
    return %c0_i32, %c0_i32_0 : i32, i32
  }
  func.func @transform_2(%arg0: i32) -> (i32, i32) {
    %c0_i32 = arith.constant 0 : i32
    %c0_i32_0 = arith.constant 0 : i32
    %c0_i32_1 = arith.constant 0 : i32
    return %c0_i32, %c0_i32_0 : i32, i32
  }
  func.func @transform_3(%arg0: i32) -> (i32, i32) {
    %c0_i32 = arith.constant 0 : i32
    %c0_i32_0 = arith.constant 0 : i32
    %c0_i32_1 = arith.constant 0 : i32
    return %c0_i32, %c0_i32_0 : i32, i32
  }
  func.func @transform_4(%arg0: i32) -> (i32, i32) {
    %c0_i32 = arith.constant 0 : i32
    %c0_i32_0 = arith.constant 0 : i32
    %c0_i32_1 = arith.constant 0 : i32
    return %c0_i32, %c0_i32_0 : i32, i32
  }
  func.func @transform_5(%arg0: i32) -> (i32, i32) {
    %c0_i32 = arith.constant 0 : i32
    %c0_i32_0 = arith.constant 0 : i32
    %c0_i32_1 = arith.constant 0 : i32
    return %c0_i32, %c0_i32_0 : i32, i32
  }
}

</mosaic_0001>

<llo_original>
// kernel: bert_joint_forward.16
$region0: #{bert_joint_forward.16}
  #allocation0 [shape = 'u32[]', space=smem, size = 0x4, offset = 0x4, fixed_abs, tag = 'smem constant byte address 0x4 - core index']
  #allocation1 [shape = 'u32[144,128]{1,0:T(1,128)}', space=vmem, size = 0x12000, scoped, tag = 'internal scratch']
  #allocation2 [shape = 'f32[16,32]{1,0:T(8,128)}', space=vmem, size = 0x2000, scoped, tag = 'scratch operand']
  %s0 = inlined_call_operand.vmem [shape: bf16[16,32], index: 0, kind: input, shape index: {}]
  %s1 = inlined_call_operand.vmem [shape: bf16[32,32], index: 1, kind: input, shape index: {}]
  %s2 = inlined_call_operand.vmem [shape: f32[1,32], index: 2, kind: input, shape index: {}]
  %s3 = inlined_call_operand.vmem [shape: bf16[16,32], index: 3, kind: input, shape index: {}]
  %s4 = inlined_call_operand.vmem [shape: f32[1,32], index: 4, kind: input, shape index: {}]
  %s5 = inlined_call_operand.vmem [shape: f32[1,32], index: 5, kind: input, shape index: {}]
  %s6 = inlined_call_operand.vmem [shape: bf16[16,32], index: 6, kind: output, shape index: {}]
  %s7 = sld [smem:[#allocation0]]
  $region42: #{bert_joint_forward.16} parent=0
    _
  %s9 = ssub.s32 1, %s7
  %s10 = scalar_select 0, %s9, %s7
  // Predicated region
  $region2: #{bert_joint_forward.16} parent=0 // pred_check
    _
  $region3: #{bert_joint_forward.16} parent=0 // pred_check_branch
    %12 = sbr.rel (0) target = $region5
  $region4: #{bert_joint_forward.16} parent=0 // pred_region
    _
  $region5: #{bert_joint_forward.16} parent=0 // pred_fallthru
    _
  // Predicated region
  $region6: #{bert_joint_forward.16} parent=0 // pred_check
    _
  $region7: #{bert_joint_forward.16} parent=0 // pred_check_branch
    %14 = sbr.rel (0) target = $region9
  $region8: #{bert_joint_forward.16} parent=0 // pred_region
    _
  $region9: #{bert_joint_forward.16} parent=0 // pred_fallthru
    _
  // Predicated region
  $region10: #{bert_joint_forward.16} parent=0 // pred_check
    _
  $region11: #{bert_joint_forward.16} parent=0 // pred_check_branch
    %16 = sbr.rel (0) target = $region13
  $region12: #{bert_joint_forward.16} parent=0 // pred_region
    _
  $region13: #{bert_joint_forward.16} parent=0 // pred_fallthru
    _
  // Predicated region
  $region14: #{bert_joint_forward.16} parent=0 // pred_check
    _
  $region15: #{bert_joint_forward.16} parent=0 // pred_check_branch
    %18 = sbr.rel (0) target = $region17
  $region16: #{bert_joint_forward.16} parent=0 // pred_region
    _
  $region17: #{bert_joint_forward.16} parent=0 // pred_fallthru
    _
  // Predicated region
  $region18: #{bert_joint_forward.16} parent=0 // pred_check
    _
  $region19: #{bert_joint_forward.16} parent=0 // pred_check_branch
    %20 = sbr.rel (0) target = $region21
  $region20: #{bert_joint_forward.16} parent=0 // pred_region
    _
  $region21: #{bert_joint_forward.16} parent=0 // pred_fallthru
    _
  // Predicated region
  $region22: #{bert_joint_forward.16} parent=0 // pred_check
    _
  $region23: #{bert_joint_forward.16} parent=0 // pred_check_branch
    %22 = sbr.rel (0) target = $region25
  $region24: #{bert_joint_forward.16} parent=0 // pred_region
    _
  $region25: #{bert_joint_forward.16} parent=0 // pred_fallthru
    _
  %p24 = scmp.eq.s32.totalorder 0, 0
  // Predicated region
  $region26: #{bert_joint_forward.16} parent=0 // pred_check
    %p25 = pneg %p24
  $region27: #{bert_joint_forward.16} parent=0 // pred_check_branch
    %27 = sbr.rel (%p25) target = $region29
  $region28: #{bert_joint_forward.16} parent=0 // pred_region
    %vm28 = vcmask 261120
    %29 = vst.msk [vmem:[#allocation2] sm:$0xff] %vm28, 0.0
    %30 = vst.msk [vmem:[#allocation2 + $0x8] sm:$0xff] %vm28, 0.0
  $region29: #{bert_joint_forward.16} parent=0 // pred_fallthru
    _
  %v31 = vld [vmem:[#allocation2] sm:$0xff]
  %v32 = vld [vmem:[#allocation2 + $0x8] sm:$0xff]
  %v33 = vld [vmem:[%s0] sm:$0xf]
  %v34 = vld [vmem:[%s0 + $0x4] sm:$0xf]
  %v35 = vld [vmem:[%s1] sm:$0xf]
  %v36 = vld [vmem:[%s1 + $0x4] sm:$0xf]
  %v37 = vld [vmem:[%s1 + $0x8] sm:$0xf]
  %v38 = vld [vmem:[%s1 + $0xc] sm:$0xf]
  %v41 = vunpack.c.l.b16 %v33
  %v42 = vunpack.c.l.b16 %v34
  %v43 = vpack.c.b16 %v42, %v41
  %v48 = vunpack.c.l.b16 %v35
  %v49 = vunpack.c.l.b16 %v36
  %v50 = vunpack.c.l.b16 %v37
  %v51 = vunpack.c.l.b16 %v38
  %v52 = vpack.c.b16 %v49, %v48
  %v53 = vpack.c.b16 %v51, %v50
  %vm56 = vcmask 261120
  %v58 = vsel %vm56, %v43, 0
  %60 = vmatprep.subr.bf16.mxu0 0
  %61 = vmatpush1.bf16.msra.mxu0 %v52
  %62 = vmatprep.subr.bf16.mxu0 0
  %63 = vmatpush1.bf16.msra.mxu0 %v53
  %64 = vmatprep.subr.bf16.mxu0 0
  %65 = vmatpush1.bf16.msra.mxu0 0
  %66 = vmatprep.subr.bf16.mxu0 0
  %67 = vmatpush1.bf16.msra.mxu0 0
  %68 = vmatprep.subr.bf16.mxu0 0
  %69 = vmatpush1.bf16.msra.mxu0 0
  %70 = vmatprep.subr.bf16.mxu0 0
  %71 = vmatpush1.bf16.msra.mxu0 0
  %72 = vmatprep.subr.bf16.mxu0 0
  %73 = vmatpush1.bf16.msra.mxu0 0
  %74 = vmatprep.subr.bf16.mxu0 0
  %75 = vmatpush1.bf16.msra.mxu0 0
  %76 = vmatprep.subr.bf16.mxu0 0
  %77 = vmatpush1.bf16.msra.mxu0 0
  %78 = vmatprep.subr.bf16.mxu0 0
  %79 = vmatpush1.bf16.msra.mxu0 0
  %80 = vmatprep.subr.bf16.mxu0 0
  %81 = vmatpush1.bf16.msra.mxu0 0
  %82 = vmatprep.subr.bf16.mxu0 0
  %83 = vmatpush1.bf16.msra.mxu0 0
  %84 = vmatprep.subr.bf16.mxu0 0
  %85 = vmatpush1.bf16.msra.mxu0 0
  %86 = vmatprep.subr.bf16.mxu0 0
  %87 = vmatpush1.bf16.msra.mxu0 0
  %88 = vmatprep.subr.bf16.mxu0 0
  %89 = vmatpush1.bf16.msra.mxu0 0
  %90 = vmatprep.subr.bf16.mxu0 0
  %91 = vmatpush1.bf16.msra.mxu0 0
  %92 = vmatprep.mubr.bf16.mxu0 0
  %93 = vmatmul.mubr.bf16.gmra.mrb[0].mxu0 %v58
  %v94 = vpop.f32.mrb[0].mxu0
  %v95 = vadd.f32 0.0, %v94
  %v96 = vpop.f32.mrb[0].mxu0
  %v97 = vpop.f32.mrb[0].mxu0
  %v98 = vadd.f32 0.0, %v97
  %v99 = vpop.f32.mrb[0].mxu0
  %100 = vdwg.mxu0
  %v101 = vadd.f32 %v31, %v95
  %v102 = vadd.f32 %v32, %v98
  %103 = vst.msk [vmem:[#allocation2] sm:$0xff] %vm56, %v101
  %104 = vst.msk [vmem:[#allocation2 + $0x8] sm:$0xff] %vm56, %v102
  // Predicated region
  $region30: #{bert_joint_forward.16} parent=0 // pred_check
    %p105 = pneg %p24
  $region31: #{bert_joint_forward.16} parent=0 // pred_check_branch
    %107 = sbr.rel (%p105) target = $region33
  $region32: #{bert_joint_forward.16} parent=0 // pred_region
    %v108 = vld [vmem:[#allocation2] sm:$0xff]
    %v109 = vld [vmem:[#allocation2 + $0x8] sm:$0xff]
    %v110 = vld [vmem:[%s2] sm:$0x1]
    %v112 = vlaneseq
    %v113 = vshrl.u32 %v112, 7
    %v114 = vsub.s32 0, %v113
    %v115 = vrot.slane %v110, %v114
    %v117 = vadd.f32 %v108, %v115
    %v118 = vadd.f32 %v109, %v115
    %v119 = vld [vmem:[%s3] sm:$0xf]
    %v120 = vld [vmem:[%s3 + $0x4] sm:$0xf]
    %v121 = vunpack.c.l.bf16 %v119
    %v122 = vunpack.c.l.bf16 %v120
    %v123 = vadd.f32 %v117, %v121
    %v124 = vadd.f32 %v118, %v122
    %v125 = vsel %vm56, %v123, 0.0
    %126 = vadd.xlane.f32.xlu0 %v125
    %v127 = vpop.xlane.xlu0 %126
    %v128 = vsel %vm56, %v124, 0.0
    %129 = vadd.xlane.f32.xlu0 %v128
    %v130 = vpop.xlane.xlu0 %129
    %v131 = vrcp.pop 32.0
    %v132 = vmul.f32 %v127, %v131
    %v133 = vmul.f32 %v130, %v131
    %v134 = vsub.f32 %v123, %v132
    %v135 = vsub.f32 %v124, %v133
    %v136 = vmul.f32 %v134, %v134
    %v137 = vmul.f32 %v135, %v135
    %v138 = vsel %vm56, %v136, 0.0
    %139 = vadd.xlane.f32.xlu0 %v138
    %v140 = vpop.xlane.xlu0 %139
    %v141 = vsel %vm56, %v137, 0.0
    %142 = vadd.xlane.f32.xlu0 %v141
    %v143 = vpop.xlane.xlu0 %142
    %v144 = vmul.f32 %v140, %v131
    %v145 = vmul.f32 %v143, %v131
    %v146 = vadd.f32 %v144, 1e-12
    %v147 = vadd.f32 %v145, 1e-12
    %v148 = vrsqrt.pop %v146
    %v149 = vrsqrt.pop %v147
    %v150 = vmul.f32 %v134, %v148
    %v151 = vmul.f32 %v135, %v149
    %v152 = vld [vmem:[%s4] sm:$0x1]
    %v154 = vlaneseq
    %v155 = vshrl.u32 %v154, 7
    %v156 = vsub.s32 0, %v155
    %v157 = vrot.slane %v152, %v156
    %v159 = vmul.f32 %v150, %v157
    %v160 = vmul.f32 %v151, %v157
    %v161 = vld [vmem:[%s5] sm:$0x1]
    %v163 = vlaneseq
    %v164 = vshrl.u32 %v163, 7
    %v165 = vsub.s32 0, %v164
    %v166 = vrot.slane %v161, %v165
    %v168 = vadd.f32 %v159, %v166
    %v169 = vadd.f32 %v160, %v166
    %v170 = vpack.c.bf16 %v169, %v168
    %v172 = vunpack.c.l.b16 %v170
    %v173 = vunpack.c.h.b16 %v170
    %v174 = vpack.c.b16 %v172, %v172
    %v175 = vpack.c.b16 %v173, %v173
    %vm178 = vcmask 257024
    %179 = vst.msk [vmem:[%s6] sm:$0xf] %vm178, %v174
    %180 = vst.msk [vmem:[%s6 + $0x4] sm:$0xf] %vm178, %v175
  $region33: #{bert_joint_forward.16} parent=0 // pred_fallthru
    _
  // Predicated region
  $region34: #{bert_joint_forward.16} parent=0 // pred_check
    _
  $region35: #{bert_joint_forward.16} parent=0 // pred_check_branch
    %182 = sbr.rel (0) target = $region37
  $region36: #{bert_joint_forward.16} parent=0 // pred_region
    _
  $region37: #{bert_joint_forward.16} parent=0 // pred_fallthru
    _
  // Predicated region
  $region38: #{bert_joint_forward.16} parent=0 // pred_check
    _
  $region39: #{bert_joint_forward.16} parent=0 // pred_check_branch
    %184 = sbr.rel (0) target = $region41
  $region40: #{bert_joint_forward.16} parent=0 // pred_region
    _
  $region41: #{bert_joint_forward.16} parent=0 // pred_fallthru
    _

// kernel: bert_joint_forward.15
$region0: #{bert_joint_forward.15}
  #allocation0 [shape = 'u32[]', space=smem, size = 0x4, offset = 0x4, fixed_abs, tag = 'smem constant byte address 0x4 - core index']
  #allocation1 [shape = 'u32[144,128]{1,0:T(1,128)}', space=vmem, size = 0x12000, scoped, tag = 'internal scratch']
  %s0 = inlined_call_operand.vmem [shape: bf16[16,96], index: 0, kind: input, shape index: {}]
  %s1 = inlined_call_operand.vmem [shape: f32[2,1,8], index: 1, kind: input, shape index: {}]
  %s2 = inlined_call_operand.vmem [shape: bf16[16,32], index: 2, kind: output, shape index: {}]
  %s3 = sld [smem:[#allocation0]]
  $region41: #{bert_joint_forward.15} parent=0
    _
  %s5 = ssub.s32 1, %s3
  %s6 = scalar_select 0, %s5, %s3
  loop: start=0, step=1, limit=4
  $region2: #{bert_joint_forward.15} parent=0 // loop_pre_header
    _
  $region3: #{bert_joint_forward.15} parent=0 // loop_header
    %s8 = sphi 0, %s12
    %p9 = scmp.ge.s32.totalorder %s8, 4
    %s18 = sphi 0, %s20
    %s21 = sphi 0, %s18
    %s22 = sphi 0, %s21
    %s38 = sphi 0, %s22
    %s44 = sphi 0, %s46
    %s47 = sphi 0, %s44
    %s48 = sphi 0, %s47
    %s64 = sphi 0, %s48
    %s70 = sphi 0, %s72
    %s73 = sphi 0, %s70
    %s74 = sphi 0, %s73
    %s90 = sphi 0, %s74
  $region4: #{bert_joint_forward.15} parent=0 // loop_header_branch
    %11 = sbr.rel (%p9) target = $region8
  $region5: #{bert_joint_forward.15} parent=0 // loop_body
    %s13 = ssub.s32 %s8, 1
    %s14 = ssub.s32 %s8, 2
    %s15 = sadd.s32 %s8, 1
    %s16 = ssub.s32 %s8, %s15
    %p17 = scmp.eq.s32.totalorder %s16, 0
    %s19 = sadd.s32 %s18, 1
    %s20 = scalar_select %p17, %s18, %s19
    %p23 = pneg %p17
    %p24 = scmp.eq.s32.totalorder %s8, 1
    %p25 = por %p23, %p24
    %p26 = scmp.ne.s32.totalorder %s18, %s21
    %p27 = scmp.eq.s32.totalorder %s8, 0
    %p28 = por %p26, %p27
    %p29 = scmp.ne.s32.totalorder %s18, %s21
    %p30 = scmp.eq.s32.totalorder %s13, 1
    %p31 = por %p29, %p30
    %p32 = scmp.ne.s32.totalorder %s21, %s22
    %p33 = scmp.eq.s32.totalorder %s13, 0
    %p34 = por %p32, %p33
    %p35 = scmp.ne.s32.totalorder %s21, %s22
    %p36 = scmp.eq.s32.totalorder %s14, 1
    %p37 = por %p35, %p36
    %p39 = scmp.ne.s32.totalorder %s22, %s38
    %p40 = scmp.eq.s32.totalorder %s14, 0
    %p41 = por %p39, %p40
    %s42 = ssub.s32 %s8, %s15
    %p43 = scmp.eq.s32.totalorder %s42, 0
    %s45 = sadd.s32 %s44, 1
    %s46 = scalar_select %p43, %s44, %s45
    %p49 = pneg %p43
    %p50 = scmp.eq.s32.totalorder %s8, 1
    %p51 = por %p49, %p50
    %p52 = scmp.ne.s32.totalorder %s44, %s47
    %p53 = scmp.eq.s32.totalorder %s8, 0
    %p54 = por %p52, %p53
    %p55 = scmp.ne.s32.totalorder %s44, %s47
    %p56 = scmp.eq.s32.totalorder %s13, 1
    %p57 = por %p55, %p56
    %p58 = scmp.ne.s32.totalorder %s47, %s48
    %p59 = scmp.eq.s32.totalorder %s13, 0
    %p60 = por %p58, %p59
    %p61 = scmp.ne.s32.totalorder %s47, %s48
    %p62 = scmp.eq.s32.totalorder %s14, 1
    %p63 = por %p61, %p62
    %p65 = scmp.ne.s32.totalorder %s48, %s64
    %p66 = scmp.eq.s32.totalorder %s14, 0
    %p67 = por %p65, %p66
    %s68 = ssub.s32 %s8, %s15
    %p69 = scmp.eq.s32.totalorder %s68, 0
    %s71 = sadd.s32 %s70, 1
    %s72 = scalar_select %p69, %s70, %s71
    %p75 = pneg %p69
    %p76 = scmp.eq.s32.totalorder %s8, 1
    %p77 = por %p75, %p76
    %p78 = scmp.ne.s32.totalorder %s70, %s73
    %p79 = scmp.eq.s32.totalorder %s8, 0
    %p80 = por %p78, %p79
    %p81 = scmp.ne.s32.totalorder %s70, %s73
    %p82 = scmp.eq.s32.totalorder %s13, 1
    %p83 = por %p81, %p82
    %p84 = scmp.ne.s32.totalorder %s73, %s74
    %p85 = scmp.eq.s32.totalorder %s13, 0
    %p86 = por %p84, %p85
    %p87 = scmp.ne.s32.totalorder %s73, %s74
    %p88 = scmp.eq.s32.totalorder %s14, 1
    %p89 = por %p87, %p88
    %p91 = scmp.ne.s32.totalorder %s74, %s90
    %p92 = scmp.eq.s32.totalorder %s14, 0
    %p93 = por %p91, %p92
    %p94 = scmp.le.s32.totalorder 1, %s8
    %p95 = scmp.lt.s32.totalorder %s8, 3
    %p96 = pnand %p94, %p95
    %p97 = pneg %p96
    // Predicated region
    $region9: #{bert_joint_forward.15} parent=5 // pred_check
      _
    $region10: #{bert_joint_forward.15} parent=5 // pred_check_branch
      %99 = sbr.rel (%p96) target = $region12
    $region11: #{bert_joint_forward.15} parent=5 // pred_region
      %s100 = ssub.s32 %s8, 1
    $region12: #{bert_joint_forward.15} parent=5 // pred_fallthru
      _
    %p101 = scmp.lt.s32.totalorder %s8, 2
    // Predicated region
    $region13: #{bert_joint_forward.15} parent=5 // pred_check
      %p102 = pneg %p101
    $region14: #{bert_joint_forward.15} parent=5 // pred_check_branch
      %104 = sbr.rel (%p102) target = $region16
    $region15: #{bert_joint_forward.15} parent=5 // pred_region
      // Predicated region
      $region17: #{bert_joint_forward.15} parent=15 // pred_check
        %p105 = pneg %p28
      $region18: #{bert_joint_forward.15} parent=15 // pred_check_branch
        %107 = sbr.rel (%p105) target = $region20
      $region19: #{bert_joint_forward.15} parent=15 // pred_region
        %p108 = scmp.lt.s32.totalorder %s8, 1
        %s109 = scalar_select %p108, %s8, 1
        %s110 = smul.addr %s109, 4
        %s111 = scalar_lea.vmem %s0, %s110
      $region20: #{bert_joint_forward.15} parent=15 // pred_fallthru
        _
      // Predicated region
      $region21: #{bert_joint_forward.15} parent=15 // pred_check
        %p112 = pneg %p54
      $region22: #{bert_joint_forward.15} parent=15 // pred_check_branch
        %114 = sbr.rel (%p112) target = $region24
      $region23: #{bert_joint_forward.15} parent=15 // pred_region
        %p115 = scmp.lt.s32.totalorder %s8, 1
        %s116 = scalar_select %p115, %s8, 1
        %s117 = scalar_lea.vmem %s1, %s116
      $region24: #{bert_joint_forward.15} parent=15 // pred_fallthru
        _
    $region16: #{bert_joint_forward.15} parent=5 // pred_fallthru
      _
    %p118 = scmp.le.s32.totalorder 1, %s8
    %p119 = scmp.lt.s32.totalorder %s8, 3
    %p120 = pnand %p118, %p119
    %p121 = pneg %p120
    // Predicated region
    $region25: #{bert_joint_forward.15} parent=5 // pred_check
      _
    $region26: #{bert_joint_forward.15} parent=5 // pred_check_branch
      %123 = sbr.rel (%p120) target = $region28
    $region27: #{bert_joint_forward.15} parent=5 // pred_region
      %s124 = ssub.s32 %s8, 1
      %p125 = scmp.lt.s32.totalorder %s13, 1
      %s126 = scalar_select %p125, %s13, 1
      %s127 = smul.addr %s126, 4
      %s128 = scalar_lea.vmem %s0, %s127
      %p129 = pneg %p34
      %p130 = pneg %p31
      %p131 = scmp.lt.s32.totalorder %s13, 1
      %s132 = scalar_select %p131, %s13, 1
      %s133 = scalar_lea.vmem %s1, %s132
      %p134 = pneg %p60
      %p135 = pneg %p57
      %p136 = pneg %p86
      %p137 = pneg %p83
      %p138 = scmp.lt.s32.totalorder %s13, 1
      %s139 = scalar_select %p138, %s13, 1
      %s140 = smul.addr %s139, 4
      %s141 = scalar_lea.vmem %s2, %s140
      %p142 = scmp.lt.s32.totalorder %s13, 1
      %s143 = scalar_select %p142, %s13, 1
      %s144 = smul.addr %s143, 4
      %s145 = scalar_lea.vmem %s0, %s144
      %p146 = scmp.lt.s32.totalorder %s13, 1
      %s147 = scalar_select %p146, %s13, 1
      %s148 = scalar_lea.vmem %s1, %s147
      %p149 = scmp.lt.s32.totalorder %s13, 1
      %s150 = scalar_select %p149, %s13, 1
      %s151 = smul.addr %s150, 4
      %s152 = scalar_lea.vmem %s2, %s151
      %v154 = vld [vmem:[%s148] sm:$0x1]
      %v155 = vld [vmem:[%s145] sm:$0xf]
      %v157 = vlaneseq
      %v158 = vshrl.u32 %v157, 7
      %v159 = vsub.s32 0, %v158
      %v160 = vrot.slane %v154, %v159
      %v163 = vunpack.c.l.b16 %v155
      %v164 = vpack.c.b16 %v163, %v163
      %165 = vrot.lane.b32.xlu0 %v164, 96
      %v166 = vpop.permute.xlu0 %165
      %vm167 = vcmask 130048
      %v169 = vsel %vm167, %v155, 0
      %v172 = vsel %vm167, %v166, 0
      %174 = vmatprep.subr.bf16.mxu0 0
      %175 = vmatpush1.bf16.xpose.msra.mxu0 %v172
      %176 = vmatprep.subr.bf16.mxu0 0
      %177 = vmatpush1.bf16.xpose.msra.mxu0 0
      %178 = vmatprep.subr.bf16.mxu0 0
      %179 = vmatpush1.bf16.xpose.msra.mxu0 0
      %180 = vmatprep.subr.bf16.mxu0 0
      %181 = vmatpush1.bf16.xpose.msra.mxu0 0
      %182 = vmatprep.subr.bf16.mxu0 0
      %183 = vmatpush1.bf16.xpose.msra.mxu0 0
      %184 = vmatprep.subr.bf16.mxu0 0
      %185 = vmatpush1.bf16.xpose.msra.mxu0 0
      %186 = vmatprep.subr.bf16.mxu0 0
      %187 = vmatpush1.bf16.xpose.msra.mxu0 0
      %188 = vmatprep.subr.bf16.mxu0 0
      %189 = vmatpush1.bf16.xpose.msra.mxu0 0
      %190 = vmatprep.subr.bf16.mxu0 0
      %191 = vmatpush1.bf16.xpose.msra.mxu0 0
      %192 = vmatprep.subr.bf16.mxu0 0
      %193 = vmatpush1.bf16.xpose.msra.mxu0 0
      %194 = vmatprep.subr.bf16.mxu0 0
      %195 = vmatpush1.bf16.xpose.msra.mxu0 0
      %196 = vmatprep.subr.bf16.mxu0 0
      %197 = vmatpush1.bf16.xpose.msra.mxu0 0
      %198 = vmatprep.subr.bf16.mxu0 0
      %199 = vmatpush1.bf16.xpose.msra.mxu0 0
      %200 = vmatprep.subr.bf16.mxu0 0
      %201 = vmatpush1.bf16.xpose.msra.mxu0 0
      %202 = vmatprep.subr.bf16.mxu0 0
      %203 = vmatpush1.bf16.xpose.msra.mxu0 0
      %204 = vmatprep.subr.bf16.mxu0 0
      %205 = vmatpush1.bf16.xpose.msra.mxu0 0
      %206 = vmatprep.mubr.bf16.mxu0 0
      %207 = vmatmul.mubr.bf16.gmra.mrb[0].mxu0 %v169
      %v208 = vpop.f32.mrb[0].mxu0
      %v209 = vadd.f32 %v160, %v208
      %v210 = vpop.f32.mrb[0].mxu0
      %v211 = vpop.f32.mrb[0].mxu0
      %v212 = vpop.f32.mrb[0].mxu0
      %213 = vdwg.mxu0
      %vm214 = vcmask 64512
      %v215 = vsel %vm214, %v209, -inf
      %216 = vmax.xlane.f32.xlu0 %v215
      %v217 = vpop.xlane.xlu0 %216
      %v218 = vsub.f32 %v209, %v217
      %v219 = vmul.f32 %v218, 1.442695
      %v220 = vpow.pop %v219
      %v221 = vsel %vm214, %v220, 0.0
      %222 = vadd.xlane.f32.xlu0 %v221
      %v223 = vpop.xlane.xlu0 %222
      %v224 = vrcp.pop %v223
      %v225 = vmul.f32 %v220, %v224
      %v226 = vpack.c.bf16 %v225, %v225
      %227 = vrot.lane.b32.xlu0 %v164, 64
      %v228 = vpop.permute.xlu0 %227
      %v230 = vsel %vm214, %v226, 0
      %vm232 = vcmask 1043456
      %v234 = vsel %vm232, %v228, 0
      %236 = vmatprep.subr.bf16.mxu0 0
      %237 = vmatpush1.bf16.msra.mxu0 %v234
      %238 = vmatprep.subr.bf16.mxu0 0
      %239 = vmatpush1.bf16.msra.mxu0 0
      %240 = vmatprep.subr.bf16.mxu0 0
      %241 = vmatpush1.bf16.msra.mxu0 0
      %242 = vmatprep.subr.bf16.mxu0 0
      %243 = vmatpush1.bf16.msra.mxu0 0
      %244 = vmatprep.subr.bf16.mxu0 0
      %245 = vmatpush1.bf16.msra.mxu0 0
      %246 = vmatprep.subr.bf16.mxu0 0
      %247 = vmatpush1.bf16.msra.mxu0 0
      %248 = vmatprep.subr.bf16.mxu0 0
      %249 = vmatpush1.bf16.msra.mxu0 0
      %250 = vmatprep.subr.bf16.mxu0 0
      %251 = vmatpush1.bf16.msra.mxu0 0
      %252 = vmatprep.subr.bf16.mxu0 0
      %253 = vmatpush1.bf16.msra.mxu0 0
      %254 = vmatprep.subr.bf16.mxu0 0
      %255 = vmatpush1.bf16.msra.mxu0 0
      %256 = vmatprep.subr.bf16.mxu0 0
      %257 = vmatpush1.bf16.msra.mxu0 0
      %258 = vmatprep.subr.bf16.mxu0 0
      %259 = vmatpush1.bf16.msra.mxu0 0
      %260 = vmatprep.subr.bf16.mxu0 0
      %261 = vmatpush1.bf16.msra.mxu0 0
      %262 = vmatprep.subr.bf16.mxu0 0
      %263 = vmatpush1.bf16.msra.mxu0 0
      %264 = vmatprep.subr.bf16.mxu0 0
      %265 = vmatpush1.bf16.msra.mxu0 0
      %266 = vmatprep.subr.bf16.mxu0 0
      %267 = vmatpush1.bf16.msra.mxu0 0
      %268 = vmatprep.mubr.bf16.mxu0 0
      %269 = vmatmul.mubr.bf16.gmra.mrb[0].mxu0 %v230
      %v270 = vpop.f32.mrb[0].mxu0
      %v271 = vadd.f32 0.0, %v270
      %v272 = vpop.f32.mrb[0].mxu0
      %v273 = vpop.f32.mrb[0].mxu0
      %v274 = vpop.f32.mrb[0].mxu0
      %275 = vdwg.mxu0
      %v276 = vpack.c.bf16 %v271, %v271
      %vm277 = vcmask 125952
      %278 = vst.msk [vmem:[%s152] sm:$0xf] %vm277, %v276
      %v279 = vld [vmem:[%s145] sm:$0xf]
      %v281 = vunpack.c.l.b16 %v279
      %v282 = vpack.c.b16 %v281, %v281
      %283 = vrot.lane.b32.xlu0 %v282, 112
      %v284 = vpop.permute.xlu0 %283
      %285 = vrot.lane.b32.xlu0 %v282, 80
      %v286 = vpop.permute.xlu0 %285
      %v288 = vsel %vm167, %v284, 0
      %v291 = vsel %vm167, %v286, 0
      %293 = vmatprep.subr.bf16.mxu0 0
      %294 = vmatpush1.bf16.xpose.msra.mxu0 %v291
      %295 = vmatprep.subr.bf16.mxu0 0
      %296 = vmatpush1.bf16.xpose.msra.mxu0 0
      %297 = vmatprep.subr.bf16.mxu0 0
      %298 = vmatpush1.bf16.xpose.msra.mxu0 0
      %299 = vmatprep.subr.bf16.mxu0 0
      %300 = vmatpush1.bf16.xpose.msra.mxu0 0
      %301 = vmatprep.subr.bf16.mxu0 0
      %302 = vmatpush1.bf16.xpose.msra.mxu0 0
      %303 = vmatprep.subr.bf16.mxu0 0
      %304 = vmatpush1.bf16.xpose.msra.mxu0 0
      %305 = vmatprep.subr.bf16.mxu0 0
      %306 = vmatpush1.bf16.xpose.msra.mxu0 0
      %307 = vmatprep.subr.bf16.mxu0 0
      %308 = vmatpush1.bf16.xpose.msra.mxu0 0
      %309 = vmatprep.subr.bf16.mxu0 0
      %310 = vmatpush1.bf16.xpose.msra.mxu0 0
      %311 = vmatprep.subr.bf16.mxu0 0
      %312 = vmatpush1.bf16.xpose.msra.mxu0 0
      %313 = vmatprep.subr.bf16.mxu0 0
      %314 = vmatpush1.bf16.xpose.msra.mxu0 0
      %315 = vmatprep.subr.bf16.mxu0 0
      %316 = vmatpush1.bf16.xpose.msra.mxu0 0
      %317 = vmatprep.subr.bf16.mxu0 0
      %318 = vmatpush1.bf16.xpose.msra.mxu0 0
      %319 = vmatprep.subr.bf16.mxu0 0
      %320 = vmatpush1.bf16.xpose.msra.mxu0 0
      %321 = vmatprep.subr.bf16.mxu0 0
      %322 = vmatpush1.bf16.xpose.msra.mxu0 0
      %323 = vmatprep.subr.bf16.mxu0 0
      %324 = vmatpush1.bf16.xpose.msra.mxu0 0
      %325 = vmatprep.mubr.bf16.mxu0 0
      %326 = vmatmul.mubr.bf16.gmra.mrb[0].mxu0 %v288
      %v327 = vpop.f32.mrb[0].mxu0
      %v328 = vadd.f32 %v160, %v327
      %v329 = vpop.f32.mrb[0].mxu0
      %v330 = vpop.f32.mrb[0].mxu0
      %v331 = vpop.f32.mrb[0].mxu0
      %332 = vdwg.mxu0
      %v333 = vsel %vm214, %v328, -inf
      %334 = vmax.xlane.f32.xlu0 %v333
      %v335 = vpop.xlane.xlu0 %334
      %v336 = vsub.f32 %v328, %v335
      %v337 = vmul.f32 %v336, 1.442695
      %v338 = vpow.pop %v337
      %v339 = vsel %vm214, %v338, 0.0
      %340 = vadd.xlane.f32.xlu0 %v339
      %v341 = vpop.xlane.xlu0 %340
      %v342 = vrcp.pop %v341
      %v343 = vmul.f32 %v338, %v342
      %v344 = vpack.c.bf16 %v343, %v343
      %345 = vrot.lane.b32.xlu0 %v282, 48
      %v346 = vpop.permute.xlu0 %345
      %v348 = vsel %vm214, %v344, 0
      %v351 = vsel %vm232, %v346, 0
      %353 = vmatprep.subr.bf16.mxu0 0
      %354 = vmatpush1.bf16.msra.mxu0 %v351
      %355 = vmatprep.subr.bf16.mxu0 0
      %356 = vmatpush1.bf16.msra.mxu0 0
      %357 = vmatprep.subr.bf16.mxu0 0
      %358 = vmatpush1.bf16.msra.mxu0 0
      %359 = vmatprep.subr.bf16.mxu0 0
      %360 = vmatpush1.bf16.msra.mxu0 0
      %361 = vmatprep.subr.bf16.mxu0 0
      %362 = vmatpush1.bf16.msra.mxu0 0
      %363 = vmatprep.subr.bf16.mxu0 0
      %364 = vmatpush1.bf16.msra.mxu0 0
      %365 = vmatprep.subr.bf16.mxu0 0
      %366 = vmatpush1.bf16.msra.mxu0 0
      %367 = vmatprep.subr.bf16.mxu0 0
      %368 = vmatpush1.bf16.msra.mxu0 0
      %369 = vmatprep.subr.bf16.mxu0 0
      %370 = vmatpush1.bf16.msra.mxu0 0
      %371 = vmatprep.subr.bf16.mxu0 0
      %372 = vmatpush1.bf16.msra.mxu0 0
      %373 = vmatprep.subr.bf16.mxu0 0
      %374 = vmatpush1.bf16.msra.mxu0 0
      %375 = vmatprep.subr.bf16.mxu0 0
      %376 = vmatpush1.bf16.msra.mxu0 0
      %377 = vmatprep.subr.bf16.mxu0 0
      %378 = vmatpush1.bf16.msra.mxu0 0
      %379 = vmatprep.subr.bf16.mxu0 0
      %380 = vmatpush1.bf16.msra.mxu0 0
      %381 = vmatprep.subr.bf16.mxu0 0
      %382 = vmatpush1.bf16.msra.mxu0 0
      %383 = vmatprep.subr.bf16.mxu0 0
      %384 = vmatpush1.bf16.msra.mxu0 0
      %385 = vmatprep.mubr.bf16.mxu0 0
      %386 = vmatmul.mubr.bf16.gmra.mrb[0].mxu0 %v348
      %v387 = vpop.f32.mrb[0].mxu0
      %v388 = vadd.f32 0.0, %v387
      %v389 = vpop.f32.mrb[0].mxu0
      %v390 = vpop.f32.mrb[0].mxu0
      %v391 = vpop.f32.mrb[0].mxu0
      %392 = vdwg.mxu0
      %v393 = vpack.c.bf16 %v388, %v388
      %v395 = vunpack.c.l.b16 %v393
      %v396 = vpack.c.b16 %v395, %v395
      %397 = vrot.lane.b32.xlu0 %v396, 16
      %v398 = vpop.permute.xlu0 %397
      %vm400 = vcmask 257152
      %401 = vst.msk [vmem:[%s152] sm:$0xf] %vm400, %v398
      %p402 = scmp.lt.s32.totalorder %s13, 1
      %s403 = scalar_select %p402, %s13, 1
      %s404 = smul.addr %s403, 4
      %s405 = scalar_lea.vmem %s2, %s404
      // Predicated region
      $region29: #{bert_joint_forward.15} parent=27 // pred_check
        %p406 = pneg %p83
      $region30: #{bert_joint_forward.15} parent=27 // pred_check_branch
        %408 = sbr.rel (%p406) target = $region32
      $region31: #{bert_joint_forward.15} parent=27 // pred_region
        _
      $region32: #{bert_joint_forward.15} parent=27 // pred_fallthru
        _
    $region28: #{bert_joint_forward.15} parent=5 // pred_fallthru
      _
    %p409 = scmp.le.s32.totalorder 2, %s8
    // Predicated region
    $region33: #{bert_joint_forward.15} parent=5 // pred_check
      %p410 = pneg %p409
    $region34: #{bert_joint_forward.15} parent=5 // pred_check_branch
      %412 = sbr.rel (%p410) target = $region36
    $region35: #{bert_joint_forward.15} parent=5 // pred_region
      %s413 = ssub.s32 %s8, 2
      // Predicated region
      $region37: #{bert_joint_forward.15} parent=35 // pred_check
        %p414 = pneg %p89
      $region38: #{bert_joint_forward.15} parent=35 // pred_check_branch
        %416 = sbr.rel (%p414) target = $region40
      $region39: #{bert_joint_forward.15} parent=35 // pred_region
        %p417 = scmp.lt.s32.totalorder %s14, 1
        %s418 = scalar_select %p417, %s14, 1
        %s419 = smul.addr %s418, 4
        %s420 = scalar_lea.vmem %s2, %s419
      $region40: #{bert_joint_forward.15} parent=35 // pred_fallthru
        _
    $region36: #{bert_joint_forward.15} parent=5 // pred_fallthru
      _
  $region6: #{bert_joint_forward.15} parent=0 // loop_footer
    %s12 = sadd.s32 1, %s8
  $region7: #{bert_joint_forward.15} parent=0 // loop_footer_branch
    %7 = sbr.rel target = $region3
  $region8: #{bert_joint_forward.15} parent=0 // loop_exit
    _

// kernel: bert_joint_forward.14
$region0: #{bert_joint_forward.14}
  #allocation0 [shape = 'u32[]', space=smem, size = 0x4, offset = 0x4, fixed_abs, tag = 'smem constant byte address 0x4 - core index']
  #allocation1 [shape = 'u32[144,128]{1,0:T(1,128)}', space=vmem, size = 0x12000, scoped, tag = 'internal scratch']
  #allocation2 [shape = 'f32[16,96]{1,0:T(8,128)}', space=vmem, size = 0x2000, scoped, tag = 'scratch operand']
  %s0 = inlined_call_operand.vmem [shape: bf16[16,32], index: 0, kind: input, shape index: {}]
  %s1 = inlined_call_operand.vmem [shape: bf16[32,96], index: 1, kind: input, shape index: {}]
  %s2 = inlined_call_operand.vmem [shape: f32[1,96], index: 2, kind: input, shape index: {}]
  %s3 = inlined_call_operand.vmem [shape: bf16[16,96], index: 3, kind: output, shape index: {}]
  %s4 = sld [smem:[#allocation0]]
  $region30: #{bert_joint_forward.14} parent=0
    _
  %s6 = ssub.s32 1, %s4
  %s7 = scalar_select 0, %s6, %s4
  // Predicated region
  $region2: #{bert_joint_forward.14} parent=0 // pred_check
    _
  $region3: #{bert_joint_forward.14} parent=0 // pred_check_branch
    %9 = sbr.rel (0) target = $region5
  $region4: #{bert_joint_forward.14} parent=0 // pred_region
    _
  $region5: #{bert_joint_forward.14} parent=0 // pred_fallthru
    _
  // Predicated region
  $region6: #{bert_joint_forward.14} parent=0 // pred_check
    _
  $region7: #{bert_joint_forward.14} parent=0 // pred_check_branch
    %11 = sbr.rel (0) target = $region9
  $region8: #{bert_joint_forward.14} parent=0 // pred_region
    _
  $region9: #{bert_joint_forward.14} parent=0 // pred_fallthru
    _
  // Predicated region
  $region10: #{bert_joint_forward.14} parent=0 // pred_check
    _
  $region11: #{bert_joint_forward.14} parent=0 // pred_check_branch
    %13 = sbr.rel (0) target = $region13
  $region12: #{bert_joint_forward.14} parent=0 // pred_region
    _
  $region13: #{bert_joint_forward.14} parent=0 // pred_fallthru
    _
  %p15 = scmp.eq.s32.totalorder 0, 0
  // Predicated region
  $region14: #{bert_joint_forward.14} parent=0 // pred_check
    %p16 = pneg %p15
  $region15: #{bert_joint_forward.14} parent=0 // pred_check_branch
    %18 = sbr.rel (%p16) target = $region17
  $region16: #{bert_joint_forward.14} parent=0 // pred_region
    %vm19 = vcmask 785408
    %20 = vst.msk [vmem:[#allocation2] sm:$0xff] %vm19, 0.0
    %21 = vst.msk [vmem:[#allocation2 + $0x8] sm:$0xff] %vm19, 0.0
  $region17: #{bert_joint_forward.14} parent=0 // pred_fallthru
    _
  %v22 = vld [vmem:[#allocation2] sm:$0xff]
  %v23 = vld [vmem:[#allocation2 + $0x8] sm:$0xff]
  %v24 = vld [vmem:[%s0] sm:$0xf]
  %v25 = vld [vmem:[%s0 + $0x4] sm:$0xf]
  %v26 = vld [vmem:[%s1] sm:$0xf]
  %v27 = vld [vmem:[%s1 + $0x4] sm:$0xf]
  %v28 = vld [vmem:[%s1 + $0x8] sm:$0xf]
  %v29 = vld [vmem:[%s1 + $0xc] sm:$0xf]
  %v32 = vunpack.c.l.b16 %v24
  %v33 = vunpack.c.l.b16 %v25
  %v34 = vpack.c.b16 %v33, %v32
  %v39 = vunpack.c.l.b16 %v26
  %v40 = vunpack.c.l.b16 %v27
  %v41 = vunpack.c.l.b16 %v28
  %v42 = vunpack.c.l.b16 %v29
  %v43 = vpack.c.b16 %v40, %v39
  %v44 = vpack.c.b16 %v42, %v41
  %vm47 = vcmask 261120
  %v49 = vsel %vm47, %v34, 0
  %51 = vmatprep.subr.bf16.mxu0 0
  %52 = vmatpush1.bf16.msra.mxu0 %v43
  %53 = vmatprep.subr.bf16.mxu0 0
  %54 = vmatpush1.bf16.msra.mxu0 %v44
  %55 = vmatprep.subr.bf16.mxu0 0
  %56 = vmatpush1.bf16.msra.mxu0 0
  %57 = vmatprep.subr.bf16.mxu0 0
  %58 = vmatpush1.bf16.msra.mxu0 0
  %59 = vmatprep.subr.bf16.mxu0 0
  %60 = vmatpush1.bf16.msra.mxu0 0
  %61 = vmatprep.subr.bf16.mxu0 0
  %62 = vmatpush1.bf16.msra.mxu0 0
  %63 = vmatprep.subr.bf16.mxu0 0
  %64 = vmatpush1.bf16.msra.mxu0 0
  %65 = vmatprep.subr.bf16.mxu0 0
  %66 = vmatpush1.bf16.msra.mxu0 0
  %67 = vmatprep.subr.bf16.mxu0 0
  %68 = vmatpush1.bf16.msra.mxu0 0
  %69 = vmatprep.subr.bf16.mxu0 0
  %70 = vmatpush1.bf16.msra.mxu0 0
  %71 = vmatprep.subr.bf16.mxu0 0
  %72 = vmatpush1.bf16.msra.mxu0 0
  %73 = vmatprep.subr.bf16.mxu0 0
  %74 = vmatpush1.bf16.msra.mxu0 0
  %75 = vmatprep.subr.bf16.mxu0 0
  %76 = vmatpush1.bf16.msra.mxu0 0
  %77 = vmatprep.subr.bf16.mxu0 0
  %78 = vmatpush1.bf16.msra.mxu0 0
  %79 = vmatprep.subr.bf16.mxu0 0
  %80 = vmatpush1.bf16.msra.mxu0 0
  %81 = vmatprep.subr.bf16.mxu0 0
  %82 = vmatpush1.bf16.msra.mxu0 0
  %83 = vmatprep.mubr.bf16.mxu0 0
  %84 = vmatmul.mubr.bf16.gmra.mrb[0].mxu0 %v49
  %v85 = vpop.f32.mrb[0].mxu0
  %v86 = vadd.f32 0.0, %v85
  %v87 = vpop.f32.mrb[0].mxu0
  %v88 = vpop.f32.mrb[0].mxu0
  %v89 = vadd.f32 0.0, %v88
  %v90 = vpop.f32.mrb[0].mxu0
  %91 = vdwg.mxu0
  %v92 = vadd.f32 %v22, %v86
  %v93 = vadd.f32 %v23, %v89
  %vm94 = vcmask 785408
  %95 = vst.msk [vmem:[#allocation2] sm:$0xff] %vm94, %v92
  %96 = vst.msk [vmem:[#allocation2 + $0x8] sm:$0xff] %vm94, %v93
  // Predicated region
  $region18: #{bert_joint_forward.14} parent=0 // pred_check
    %p97 = pneg %p15
  $region19: #{bert_joint_forward.14} parent=0 // pred_check_branch
    %99 = sbr.rel (%p97) target = $region21
  $region20: #{bert_joint_forward.14} parent=0 // pred_region
    %v100 = vld [vmem:[#allocation2] sm:$0xff]
    %v101 = vld [vmem:[#allocation2 + $0x8] sm:$0xff]
    %v102 = vld [vmem:[%s2] sm:$0x1]
    %v104 = vlaneseq
    %v105 = vshrl.u32 %v104, 7
    %v106 = vsub.s32 0, %v105
    %v107 = vrot.slane %v102, %v106
    %v109 = vadd.f32 %v100, %v107
    %v110 = vadd.f32 %v101, %v107
    %v111 = vpack.c.bf16 %v110, %v109
    %v113 = vunpack.c.l.b16 %v111
    %v114 = vunpack.c.h.b16 %v111
    %v115 = vpack.c.b16 %v113, %v113
    %v116 = vpack.c.b16 %v114, %v114
    %vm119 = vcmask 781312
    %120 = vst.msk [vmem:[%s3] sm:$0xf] %vm119, %v115
    %121 = vst.msk [vmem:[%s3 + $0x4] sm:$0xf] %vm119, %v116
  $region21: #{bert_joint_forward.14} parent=0 // pred_fallthru
    _
  // Predicated region
  $region22: #{bert_joint_forward.14} parent=0 // pred_check
    _
  $region23: #{bert_joint_forward.14} parent=0 // pred_check_branch
    %123 = sbr.rel (0) target = $region25
  $region24: #{bert_joint_forward.14} parent=0 // pred_region
    _
  $region25: #{bert_joint_forward.14} parent=0 // pred_fallthru
    _
  // Predicated region
  $region26: #{bert_joint_forward.14} parent=0 // pred_check
    _
  $region27: #{bert_joint_forward.14} parent=0 // pred_check_branch
    %125 = sbr.rel (0) target = $region29
  $region28: #{bert_joint_forward.14} parent=0 // pred_region
    _
  $region29: #{bert_joint_forward.14} parent=0 // pred_fallthru
    _

// kernel: bert_joint_forward.13
$region0: #{bert_joint_forward.13}
  #allocation0 [shape = 'u32[]', space=smem, size = 0x4, offset = 0x4, fixed_abs, tag = 'smem constant byte address 0x4 - core index']
  #allocation1 [shape = 'u32[144,128]{1,0:T(1,128)}', space=vmem, size = 0x12000, scoped, tag = 'internal scratch']
  %s0 = inlined_call_operand.vmem [shape: bf16[16,32], index: 0, kind: input, shape index: {}]
  %s1 = inlined_call_operand.vmem [shape: bf16[8,32], index: 1, kind: input, shape index: {}]
  %s2 = inlined_call_operand.vmem [shape: f32[1,32], index: 2, kind: input, shape index: {}]
  %s3 = inlined_call_operand.vmem [shape: f32[1,32], index: 3, kind: input, shape index: {}]
  %s4 = inlined_call_operand.vmem [shape: bf16[16,32], index: 4, kind: output, shape index: {}]
  %s5 = sld [smem:[#allocation0]]
  $region49: #{bert_joint_forward.13} parent=0
    _
  %s7 = ssub.s32 1, %s5
  %s8 = scalar_select 0, %s7, %s5
  loop: start=0, step=1, limit=4
  $region2: #{bert_joint_forward.13} parent=0 // loop_pre_header
    _
  $region3: #{bert_joint_forward.13} parent=0 // loop_header
    %s10 = sphi 0, %s14
    %p11 = scmp.ge.s32.totalorder %s10, 4
    %s20 = sphi 0, %s22
    %s23 = sphi 0, %s20
    %s24 = sphi 0, %s23
    %s40 = sphi 0, %s24
    %s44 = sphi 0, %s44
    %s46 = sphi 0, %s44
    %s47 = sphi 0, %s46
    %s61 = sphi 0, %s47
    %s65 = sphi 0, %s65
    %s67 = sphi 0, %s65
    %s68 = sphi 0, %s67
    %s82 = sphi 0, %s68
    %s86 = sphi 0, %s86
    %s88 = sphi 0, %s86
    %s89 = sphi 0, %s88
    %s103 = sphi 0, %s89
    %s109 = sphi 0, %s111
    %s112 = sphi 0, %s109
    %s113 = sphi 0, %s112
    %s129 = sphi 0, %s113
  $region4: #{bert_joint_forward.13} parent=0 // loop_header_branch
    %13 = sbr.rel (%p11) target = $region8
  $region5: #{bert_joint_forward.13} parent=0 // loop_body
    %s15 = ssub.s32 %s10, 1
    %s16 = ssub.s32 %s10, 2
    %s17 = sadd.s32 %s10, 1
    %s18 = ssub.s32 %s10, %s17
    %p19 = scmp.eq.s32.totalorder %s18, 0
    %s21 = sadd.s32 %s20, 1
    %s22 = scalar_select %p19, %s20, %s21
    %p25 = pneg %p19
    %p26 = scmp.eq.s32.totalorder %s10, 1
    %p27 = por %p25, %p26
    %p28 = scmp.ne.s32.totalorder %s20, %s23
    %p29 = scmp.eq.s32.totalorder %s10, 0
    %p30 = por %p28, %p29
    %p31 = scmp.ne.s32.totalorder %s20, %s23
    %p32 = scmp.eq.s32.totalorder %s15, 1
    %p33 = por %p31, %p32
    %p34 = scmp.ne.s32.totalorder %s23, %s24
    %p35 = scmp.eq.s32.totalorder %s15, 0
    %p36 = por %p34, %p35
    %p37 = scmp.ne.s32.totalorder %s23, %s24
    %p38 = scmp.eq.s32.totalorder %s16, 1
    %p39 = por %p37, %p38
    %p41 = scmp.ne.s32.totalorder %s24, %s40
    %p42 = scmp.eq.s32.totalorder %s16, 0
    %p43 = por %p41, %p42
    %s45 = sadd.s32 %s44, 1
    %p48 = scmp.eq.s32.totalorder %s10, 1
    %p49 = scmp.ne.s32.totalorder %s44, %s46
    %p50 = scmp.eq.s32.totalorder %s10, 0
    %p51 = por %p49, %p50
    %p52 = scmp.ne.s32.totalorder %s44, %s46
    %p53 = scmp.eq.s32.totalorder %s15, 1
    %p54 = por %p52, %p53
    %p55 = scmp.ne.s32.totalorder %s46, %s47
    %p56 = scmp.eq.s32.totalorder %s15, 0
    %p57 = por %p55, %p56
    %p58 = scmp.ne.s32.totalorder %s46, %s47
    %p59 = scmp.eq.s32.totalorder %s16, 1
    %p60 = por %p58, %p59
    %p62 = scmp.ne.s32.totalorder %s47, %s61
    %p63 = scmp.eq.s32.totalorder %s16, 0
    %p64 = por %p62, %p63
    %s66 = sadd.s32 %s65, 1
    %p69 = scmp.eq.s32.totalorder %s10, 1
    %p70 = scmp.ne.s32.totalorder %s65, %s67
    %p71 = scmp.eq.s32.totalorder %s10, 0
    %p72 = por %p70, %p71
    %p73 = scmp.ne.s32.totalorder %s65, %s67
    %p74 = scmp.eq.s32.totalorder %s15, 1
    %p75 = por %p73, %p74
    %p76 = scmp.ne.s32.totalorder %s67, %s68
    %p77 = scmp.eq.s32.totalorder %s15, 0
    %p78 = por %p76, %p77
    %p79 = scmp.ne.s32.totalorder %s67, %s68
    %p80 = scmp.eq.s32.totalorder %s16, 1
    %p81 = por %p79, %p80
    %p83 = scmp.ne.s32.totalorder %s68, %s82
    %p84 = scmp.eq.s32.totalorder %s16, 0
    %p85 = por %p83, %p84
    %s87 = sadd.s32 %s86, 1
    %p90 = scmp.eq.s32.totalorder %s10, 1
    %p91 = scmp.ne.s32.totalorder %s86, %s88
    %p92 = scmp.eq.s32.totalorder %s10, 0
    %p93 = por %p91, %p92
    %p94 = scmp.ne.s32.totalorder %s86, %s88
    %p95 = scmp.eq.s32.totalorder %s15, 1
    %p96 = por %p94, %p95
    %p97 = scmp.ne.s32.totalorder %s88, %s89
    %p98 = scmp.eq.s32.totalorder %s15, 0
    %p99 = por %p97, %p98
    %p100 = scmp.ne.s32.totalorder %s88, %s89
    %p101 = scmp.eq.s32.totalorder %s16, 1
    %p102 = por %p100, %p101
    %p104 = scmp.ne.s32.totalorder %s89, %s103
    %p105 = scmp.eq.s32.totalorder %s16, 0
    %p106 = por %p104, %p105
    %s107 = ssub.s32 %s10, %s17
    %p108 = scmp.eq.s32.totalorder %s107, 0
    %s110 = sadd.s32 %s109, 1
    %s111 = scalar_select %p108, %s109, %s110
    %p114 = pneg %p108
    %p115 = scmp.eq.s32.totalorder %s10, 1
    %p116 = por %p114, %p115
    %p117 = scmp.ne.s32.totalorder %s109, %s112
    %p118 = scmp.eq.s32.totalorder %s10, 0
    %p119 = por %p117, %p118
    %p120 = scmp.ne.s32.totalorder %s109, %s112
    %p121 = scmp.eq.s32.totalorder %s15, 1
    %p122 = por %p120, %p121
    %p123 = scmp.ne.s32.totalorder %s112, %s113
    %p124 = scmp.eq.s32.totalorder %s15, 0
    %p125 = por %p123, %p124
    %p126 = scmp.ne.s32.totalorder %s112, %s113
    %p127 = scmp.eq.s32.totalorder %s16, 1
    %p128 = por %p126, %p127
    %p130 = scmp.ne.s32.totalorder %s113, %s129
    %p131 = scmp.eq.s32.totalorder %s16, 0
    %p132 = por %p130, %p131
    %p133 = scmp.le.s32.totalorder 1, %s10
    %p134 = scmp.lt.s32.totalorder %s10, 3
    %p135 = pnand %p133, %p134
    %p136 = pneg %p135
    // Predicated region
    $region9: #{bert_joint_forward.13} parent=5 // pred_check
      _
    $region10: #{bert_joint_forward.13} parent=5 // pred_check_branch
      %138 = sbr.rel (%p135) target = $region12
    $region11: #{bert_joint_forward.13} parent=5 // pred_region
      %s139 = ssub.s32 %s10, 1
      // Predicated region
      $region13: #{bert_joint_forward.13} parent=11 // pred_check
        %p140 = pneg %p57
      $region14: #{bert_joint_forward.13} parent=11 // pred_check_branch
        %142 = sbr.rel (%p140) target = $region16
      $region15: #{bert_joint_forward.13} parent=11 // pred_region
        _
      $region16: #{bert_joint_forward.13} parent=11 // pred_fallthru
        _
      // Predicated region
      $region17: #{bert_joint_forward.13} parent=11 // pred_check
        %p143 = pneg %p78
      $region18: #{bert_joint_forward.13} parent=11 // pred_check_branch
        %145 = sbr.rel (%p143) target = $region20
      $region19: #{bert_joint_forward.13} parent=11 // pred_region
        _
      $region20: #{bert_joint_forward.13} parent=11 // pred_fallthru
        _
      // Predicated region
      $region21: #{bert_joint_forward.13} parent=11 // pred_check
        %p146 = pneg %p99
      $region22: #{bert_joint_forward.13} parent=11 // pred_check_branch
        %148 = sbr.rel (%p146) target = $region24
      $region23: #{bert_joint_forward.13} parent=11 // pred_region
        _
      $region24: #{bert_joint_forward.13} parent=11 // pred_fallthru
        _
    $region12: #{bert_joint_forward.13} parent=5 // pred_fallthru
      _
    %p149 = scmp.lt.s32.totalorder %s10, 2
    // Predicated region
    $region25: #{bert_joint_forward.13} parent=5 // pred_check
      %p150 = pneg %p149
    $region26: #{bert_joint_forward.13} parent=5 // pred_check_branch
      %152 = sbr.rel (%p150) target = $region28
    $region27: #{bert_joint_forward.13} parent=5 // pred_region
      // Predicated region
      $region29: #{bert_joint_forward.13} parent=27 // pred_check
        %p153 = pneg %p30
      $region30: #{bert_joint_forward.13} parent=27 // pred_check_branch
        %155 = sbr.rel (%p153) target = $region32
      $region31: #{bert_joint_forward.13} parent=27 // pred_region
        %p156 = scmp.lt.s32.totalorder %s10, 1
        %s157 = scalar_select %p156, %s10, 1
        %s158 = smul.addr %s157, 4
        %s159 = scalar_lea.vmem %s0, %s158
      $region32: #{bert_joint_forward.13} parent=27 // pred_fallthru
        _
    $region28: #{bert_joint_forward.13} parent=5 // pred_fallthru
      _
    %p160 = scmp.le.s32.totalorder 1, %s10
    %p161 = scmp.lt.s32.totalorder %s10, 3
    %p162 = pnand %p160, %p161
    %p163 = pneg %p162
    // Predicated region
    $region33: #{bert_joint_forward.13} parent=5 // pred_check
      _
    $region34: #{bert_joint_forward.13} parent=5 // pred_check_branch
      %165 = sbr.rel (%p162) target = $region36
    $region35: #{bert_joint_forward.13} parent=5 // pred_region
      %s166 = ssub.s32 %s10, 1
      %p167 = scmp.lt.s32.totalorder %s15, 1
      %s168 = scalar_select %p167, %s15, 1
      %s169 = smul.addr %s168, 4
      %s170 = scalar_lea.vmem %s0, %s169
      %p171 = pneg %p36
      %p172 = pneg %p33
      %p173 = pneg %p57
      %p174 = pneg %p54
      %p175 = pneg %p78
      %p176 = pneg %p75
      %p177 = pneg %p99
      %p178 = pneg %p96
      %p179 = pneg %p125
      %p180 = pneg %p122
      %p181 = scmp.lt.s32.totalorder %s15, 1
      %s182 = scalar_select %p181, %s15, 1
      %s183 = smul.addr %s182, 4
      %s184 = scalar_lea.vmem %s4, %s183
      %p185 = scmp.lt.s32.totalorder %s15, 1
      %s186 = scalar_select %p185, %s15, 1
      %s187 = smul.addr %s186, 4
      %s188 = scalar_lea.vmem %s0, %s187
      %p189 = scmp.lt.s32.totalorder %s15, 1
      %s190 = scalar_select %p189, %s15, 1
      %s191 = smul.addr %s190, 4
      %s192 = scalar_lea.vmem %s4, %s191
      %v193 = vld [vmem:[%s188] sm:$0xf]
      %v194 = vunpack.c.l.bf16 %v193
      %v195 = vld [vmem:[%s1] sm:$0xf]
      %v196 = vunpack.c.l.bf16 %v195
      %v197 = vadd.f32 %v194, %v196
      %vm198 = vcmask 261120
      %v199 = vsel %vm198, %v197, 0.0
      %200 = vadd.xlane.f32.xlu0 %v199
      %v201 = vpop.xlane.xlu0 %200
      %v202 = vrcp.pop 32.0
      %v203 = vmul.f32 %v201, %v202
      %v204 = vsub.f32 %v197, %v203
      %v205 = vmul.f32 %v204, %v204
      %v206 = vsel %vm198, %v205, 0.0
      %207 = vadd.xlane.f32.xlu0 %v206
      %v208 = vpop.xlane.xlu0 %207
      %v209 = vmul.f32 %v208, %v202
      %v210 = vadd.f32 %v209, 1e-12
      %v211 = vrsqrt.pop %v210
      %v212 = vmul.f32 %v204, %v211
      %v213 = vld [vmem:[%s2] sm:$0x1]
      %v215 = vlaneseq
      %v216 = vshrl.u32 %v215, 7
      %v217 = vsub.s32 0, %v216
      %v218 = vrot.slane %v213, %v217
      %v220 = vmul.f32 %v212, %v218
      %v221 = vld [vmem:[%s3] sm:$0x1]
      %v223 = vlaneseq
      %v224 = vshrl.u32 %v223, 7
      %v225 = vsub.s32 0, %v224
      %v226 = vrot.slane %v221, %v225
      %v228 = vadd.f32 %v220, %v226
      %v229 = vpack.c.bf16 %v228, %v228
      %vm230 = vcmask 257024
      %231 = vst.msk [vmem:[%s192] sm:$0xf] %vm230, %v229
      %p232 = scmp.lt.s32.totalorder %s15, 1
      %s233 = scalar_select %p232, %s15, 1
      %s234 = smul.addr %s233, 4
      %s235 = scalar_lea.vmem %s4, %s234
      // Predicated region
      $region37: #{bert_joint_forward.13} parent=35 // pred_check
        %p236 = pneg %p122
      $region38: #{bert_joint_forward.13} parent=35 // pred_check_branch
        %238 = sbr.rel (%p236) target = $region40
      $region39: #{bert_joint_forward.13} parent=35 // pred_region
        _
      $region40: #{bert_joint_forward.13} parent=35 // pred_fallthru
        _
    $region36: #{bert_joint_forward.13} parent=5 // pred_fallthru
      _
    %p239 = scmp.le.s32.totalorder 2, %s10
    // Predicated region
    $region41: #{bert_joint_forward.13} parent=5 // pred_check
      %p240 = pneg %p239
    $region42: #{bert_joint_forward.13} parent=5 // pred_check_branch
      %242 = sbr.rel (%p240) target = $region44
    $region43: #{bert_joint_forward.13} parent=5 // pred_region
      %s243 = ssub.s32 %s10, 2
      // Predicated region
      $region45: #{bert_joint_forward.13} parent=43 // pred_check
        %p244 = pneg %p128
      $region46: #{bert_joint_forward.13} parent=43 // pred_check_branch
        %246 = sbr.rel (%p244) target = $region48
      $region47: #{bert_joint_forward.13} parent=43 // pred_region
        %p247 = scmp.lt.s32.totalorder %s16, 1
        %s248 = scalar_select %p247, %s16, 1
        %s249 = smul.addr %s248, 4
        %s250 = scalar_lea.vmem %s4, %s249
      $region48: #{bert_joint_forward.13} parent=43 // pred_fallthru
        _
    $region44: #{bert_joint_forward.13} parent=5 // pred_fallthru
      _
  $region6: #{bert_joint_forward.13} parent=0 // loop_footer
    %s14 = sadd.s32 1, %s10
  $region7: #{bert_joint_forward.13} parent=0 // loop_footer_branch
    %9 = sbr.rel target = $region3
  $region8: #{bert_joint_forward.13} parent=0 // loop_exit
    _

// kernel: bert_joint_forward.25
$region0: #{bert_joint_forward.25}
  #allocation0 [shape = 'u32[]', space=smem, size = 0x4, offset = 0x4, fixed_abs, tag = 'smem constant byte address 0x4 - core index']
  #allocation1 [shape = 'u32[144,128]{1,0:T(1,128)}', space=vmem, size = 0x12000, scoped, tag = 'internal scratch']
  #allocation2 [shape = 'f32[16,128]{1,0:T(8,128)}', space=vmem, size = 0x2000, scoped, tag = 'scratch operand']
  %s0 = inlined_call_operand.vmem [shape: bf16[16,32], index: 0, kind: input, shape index: {}]
  %s1 = inlined_call_operand.vmem [shape: bf16[32,128], index: 1, kind: input, shape index: {}]
  %s2 = inlined_call_operand.vmem [shape: f32[1,128], index: 2, kind: input, shape index: {}]
  %s3 = inlined_call_operand.vmem [shape: f32[16,128], index: 3, kind: output, shape index: {}]
  %s4 = sld [smem:[#allocation0]]
  $region30: #{bert_joint_forward.25} parent=0
    _
  %s6 = ssub.s32 1, %s4
  %s7 = scalar_select 0, %s6, %s4
  // Predicated region
  $region2: #{bert_joint_forward.25} parent=0 // pred_check
    _
  $region3: #{bert_joint_forward.25} parent=0 // pred_check_branch
    %9 = sbr.rel (0) target = $region5
  $region4: #{bert_joint_forward.25} parent=0 // pred_region
    _
  $region5: #{bert_joint_forward.25} parent=0 // pred_fallthru
    _
  // Predicated region
  $region6: #{bert_joint_forward.25} parent=0 // pred_check
    _
  $region7: #{bert_joint_forward.25} parent=0 // pred_check_branch
    %11 = sbr.rel (0) target = $region9
  $region8: #{bert_joint_forward.25} parent=0 // pred_region
    _
  $region9: #{bert_joint_forward.25} parent=0 // pred_fallthru
    _
  // Predicated region
  $region10: #{bert_joint_forward.25} parent=0 // pred_check
    _
  $region11: #{bert_joint_forward.25} parent=0 // pred_check_branch
    %13 = sbr.rel (0) target = $region13
  $region12: #{bert_joint_forward.25} parent=0 // pred_region
    _
  $region13: #{bert_joint_forward.25} parent=0 // pred_fallthru
    _
  %p15 = scmp.eq.s32.totalorder 0, 0
  // Predicated region
  $region14: #{bert_joint_forward.25} parent=0 // pred_check
    %p16 = pneg %p15
  $region15: #{bert_joint_forward.25} parent=0 // pred_check_branch
    %18 = sbr.rel (%p16) target = $region17
  $region16: #{bert_joint_forward.25} parent=0 // pred_region
    %19 = vst [vmem:[#allocation2] sm:$0xff] 0.0
    %20 = vst [vmem:[#allocation2 + $0x8] sm:$0xff] 0.0
  $region17: #{bert_joint_forward.25} parent=0 // pred_fallthru
    _
  %v21 = vld [vmem:[#allocation2] sm:$0xff]
  %v22 = vld [vmem:[#allocation2 + $0x8] sm:$0xff]
  %v23 = vld [vmem:[%s0] sm:$0xf]
  %v24 = vld [vmem:[%s0 + $0x4] sm:$0xf]
  %v25 = vld [vmem:[%s1] sm:$0xf]
  %v26 = vld [vmem:[%s1 + $0x4] sm:$0xf]
  %v27 = vld [vmem:[%s1 + $0x8] sm:$0xf]
  %v28 = vld [vmem:[%s1 + $0xc] sm:$0xf]
  %v31 = vunpack.c.l.b16 %v23
  %v32 = vunpack.c.l.b16 %v24
  %v33 = vpack.c.b16 %v32, %v31
  %v38 = vunpack.c.l.b16 %v25
  %v39 = vunpack.c.l.b16 %v26
  %v40 = vunpack.c.l.b16 %v27
  %v41 = vunpack.c.l.b16 %v28
  %v42 = vpack.c.b16 %v39, %v38
  %v43 = vpack.c.b16 %v41, %v40
  %vm46 = vcmask 261120
  %v48 = vsel %vm46, %v33, 0
  %50 = vmatprep.subr.bf16.mxu0 0
  %51 = vmatpush1.bf16.msra.mxu0 %v42
  %52 = vmatprep.subr.bf16.mxu0 0
  %53 = vmatpush1.bf16.msra.mxu0 %v43
  %54 = vmatprep.subr.bf16.mxu0 0
  %55 = vmatpush1.bf16.msra.mxu0 0
  %56 = vmatprep.subr.bf16.mxu0 0
  %57 = vmatpush1.bf16.msra.mxu0 0
  %58 = vmatprep.subr.bf16.mxu0 0
  %59 = vmatpush1.bf16.msra.mxu0 0
  %60 = vmatprep.subr.bf16.mxu0 0
  %61 = vmatpush1.bf16.msra.mxu0 0
  %62 = vmatprep.subr.bf16.mxu0 0
  %63 = vmatpush1.bf16.msra.mxu0 0
  %64 = vmatprep.subr.bf16.mxu0 0
  %65 = vmatpush1.bf16.msra.mxu0 0
  %66 = vmatprep.subr.bf16.mxu0 0
  %67 = vmatpush1.bf16.msra.mxu0 0
  %68 = vmatprep.subr.bf16.mxu0 0
  %69 = vmatpush1.bf16.msra.mxu0 0
  %70 = vmatprep.subr.bf16.mxu0 0
  %71 = vmatpush1.bf16.msra.mxu0 0
  %72 = vmatprep.subr.bf16.mxu0 0
  %73 = vmatpush1.bf16.msra.mxu0 0
  %74 = vmatprep.subr.bf16.mxu0 0
  %75 = vmatpush1.bf16.msra.mxu0 0
  %76 = vmatprep.subr.bf16.mxu0 0
  %77 = vmatpush1.bf16.msra.mxu0 0
  %78 = vmatprep.subr.bf16.mxu0 0
  %79 = vmatpush1.bf16.msra.mxu0 0
  %80 = vmatprep.subr.bf16.mxu0 0
  %81 = vmatpush1.bf16.msra.mxu0 0
  %82 = vmatprep.mubr.bf16.mxu0 0
  %83 = vmatmul.mubr.bf16.gmra.mrb[0].mxu0 %v48
  %v84 = vpop.f32.mrb[0].mxu0
  %v85 = vadd.f32 0.0, %v84
  %v86 = vpop.f32.mrb[0].mxu0
  %v87 = vpop.f32.mrb[0].mxu0
  %v88 = vadd.f32 0.0, %v87
  %v89 = vpop.f32.mrb[0].mxu0
  %90 = vdwg.mxu0
  %v91 = vadd.f32 %v21, %v85
  %v92 = vadd.f32 %v22, %v88
  %93 = vst [vmem:[#allocation2] sm:$0xff] %v91
  %94 = vst [vmem:[#allocation2 + $0x8] sm:$0xff] %v92
  // Predicated region
  $region18: #{bert_joint_forward.25} parent=0 // pred_check
    %p95 = pneg %p15
  $region19: #{bert_joint_forward.25} parent=0 // pred_check_branch
    %97 = sbr.rel (%p95) target = $region21
  $region20: #{bert_joint_forward.25} parent=0 // pred_region
    %v98 = vld [vmem:[#allocation2] sm:$0xff]
    %v99 = vld [vmem:[#allocation2 + $0x8] sm:$0xff]
    %v100 = vld [vmem:[%s2] sm:$0x1]
    %v102 = vlaneseq
    %v103 = vshrl.u32 %v102, 7
    %v104 = vsub.s32 0, %v103
    %v105 = vrot.slane %v100, %v104
    %v107 = vadd.f32 %v98, %v105
    %v108 = vadd.f32 %v99, %v105
    %109 = vst [vmem:[%s3] sm:$0xff] %v107
    %110 = vst [vmem:[%s3 + $0x8] sm:$0xff] %v108
  $region21: #{bert_joint_forward.25} parent=0 // pred_fallthru
    _
  // Predicated region
  $region22: #{bert_joint_forward.25} parent=0 // pred_check
    _
  $region23: #{bert_joint_forward.25} parent=0 // pred_check_branch
    %112 = sbr.rel (0) target = $region25
  $region24: #{bert_joint_forward.25} parent=0 // pred_region
    _
  $region25: #{bert_joint_forward.25} parent=0 // pred_fallthru
    _
  // Predicated region
  $region26: #{bert_joint_forward.25} parent=0 // pred_check
    _
  $region27: #{bert_joint_forward.25} parent=0 // pred_check_branch
    %114 = sbr.rel (0) target = $region29
  $region28: #{bert_joint_forward.25} parent=0 // pred_region
    _
  $region29: #{bert_joint_forward.25} parent=0 // pred_fallthru
    _

// kernel: bert_joint_forward.17
$region0: #{bert_joint_forward.17}
  #allocation0 [shape = 'u32[]', space=smem, size = 0x4, offset = 0x4, fixed_abs, tag = 'smem constant byte address 0x4 - core index']
  #allocation1 [shape = 'u32[144,128]{1,0:T(1,128)}', space=vmem, size = 0x12000, scoped, tag = 'internal scratch']
  #allocation2 [shape = 'f32[16,64]{1,0:T(8,128)}', space=vmem, size = 0x2000, scoped, tag = 'scratch operand']
  %s0 = inlined_call_operand.vmem [shape: bf16[16,32], index: 0, kind: input, shape index: {}]
  %s1 = inlined_call_operand.vmem [shape: bf16[32,64], index: 1, kind: input, shape index: {}]
  %s2 = inlined_call_operand.vmem [shape: f32[1,64], index: 2, kind: input, shape index: {}]
  %s3 = inlined_call_operand.vmem [shape: bf16[16,64], index: 3, kind: output, shape index: {}]
  %s4 = sld [smem:[#allocation0]]
  $region30: #{bert_joint_forward.17} parent=0
    _
  %s6 = ssub.s32 1, %s4
  %s7 = scalar_select 0, %s6, %s4
  // Predicated region
  $region2: #{bert_joint_forward.17} parent=0 // pred_check
    _
  $region3: #{bert_joint_forward.17} parent=0 // pred_check_branch
    %9 = sbr.rel (0) target = $region5
  $region4: #{bert_joint_forward.17} parent=0 // pred_region
    _
  $region5: #{bert_joint_forward.17} parent=0 // pred_fallthru
    _
  // Predicated region
  $region6: #{bert_joint_forward.17} parent=0 // pred_check
    _
  $region7: #{bert_joint_forward.17} parent=0 // pred_check_branch
    %11 = sbr.rel (0) target = $region9
  $region8: #{bert_joint_forward.17} parent=0 // pred_region
    _
  $region9: #{bert_joint_forward.17} parent=0 // pred_fallthru
    _
  // Predicated region
  $region10: #{bert_joint_forward.17} parent=0 // pred_check
    _
  $region11: #{bert_joint_forward.17} parent=0 // pred_check_branch
    %13 = sbr.rel (0) target = $region13
  $region12: #{bert_joint_forward.17} parent=0 // pred_region
    _
  $region13: #{bert_joint_forward.17} parent=0 // pred_fallthru
    _
  %p15 = scmp.eq.s32.totalorder 0, 0
  // Predicated region
  $region14: #{bert_joint_forward.17} parent=0 // pred_check
    %p16 = pneg %p15
  $region15: #{bert_joint_forward.17} parent=0 // pred_check_branch
    %18 = sbr.rel (%p16) target = $region17
  $region16: #{bert_joint_forward.17} parent=0 // pred_region
    %vm19 = vcmask 523264
    %20 = vst.msk [vmem:[#allocation2] sm:$0xff] %vm19, 0.0
    %21 = vst.msk [vmem:[#allocation2 + $0x8] sm:$0xff] %vm19, 0.0
  $region17: #{bert_joint_forward.17} parent=0 // pred_fallthru
    _
  %v22 = vld [vmem:[#allocation2] sm:$0xff]
  %v23 = vld [vmem:[#allocation2 + $0x8] sm:$0xff]
  %v24 = vld [vmem:[%s0] sm:$0xf]
  %v25 = vld [vmem:[%s0 + $0x4] sm:$0xf]
  %v26 = vld [vmem:[%s1] sm:$0xf]
  %v27 = vld [vmem:[%s1 + $0x4] sm:$0xf]
  %v28 = vld [vmem:[%s1 + $0x8] sm:$0xf]
  %v29 = vld [vmem:[%s1 + $0xc] sm:$0xf]
  %v32 = vunpack.c.l.b16 %v24
  %v33 = vunpack.c.l.b16 %v25
  %v34 = vpack.c.b16 %v33, %v32
  %v39 = vunpack.c.l.b16 %v26
  %v40 = vunpack.c.l.b16 %v27
  %v41 = vunpack.c.l.b16 %v28
  %v42 = vunpack.c.l.b16 %v29
  %v43 = vpack.c.b16 %v40, %v39
  %v44 = vpack.c.b16 %v42, %v41
  %vm47 = vcmask 261120
  %v49 = vsel %vm47, %v34, 0
  %51 = vmatprep.subr.bf16.mxu0 0
  %52 = vmatpush1.bf16.msra.mxu0 %v43
  %53 = vmatprep.subr.bf16.mxu0 0
  %54 = vmatpush1.bf16.msra.mxu0 %v44
  %55 = vmatprep.subr.bf16.mxu0 0
  %56 = vmatpush1.bf16.msra.mxu0 0
  %57 = vmatprep.subr.bf16.mxu0 0
  %58 = vmatpush1.bf16.msra.mxu0 0
  %59 = vmatprep.subr.bf16.mxu0 0
  %60 = vmatpush1.bf16.msra.mxu0 0
  %61 = vmatprep.subr.bf16.mxu0 0
  %62 = vmatpush1.bf16.msra.mxu0 0
  %63 = vmatprep.subr.bf16.mxu0 0
  %64 = vmatpush1.bf16.msra.mxu0 0
  %65 = vmatprep.subr.bf16.mxu0 0
  %66 = vmatpush1.bf16.msra.mxu0 0
  %67 = vmatprep.subr.bf16.mxu0 0
  %68 = vmatpush1.bf16.msra.mxu0 0
  %69 = vmatprep.subr.bf16.mxu0 0
  %70 = vmatpush1.bf16.msra.mxu0 0
  %71 = vmatprep.subr.bf16.mxu0 0
  %72 = vmatpush1.bf16.msra.mxu0 0
  %73 = vmatprep.subr.bf16.mxu0 0
  %74 = vmatpush1.bf16.msra.mxu0 0
  %75 = vmatprep.subr.bf16.mxu0 0
  %76 = vmatpush1.bf16.msra.mxu0 0
  %77 = vmatprep.subr.bf16.mxu0 0
  %78 = vmatpush1.bf16.msra.mxu0 0
  %79 = vmatprep.subr.bf16.mxu0 0
  %80 = vmatpush1.bf16.msra.mxu0 0
  %81 = vmatprep.subr.bf16.mxu0 0
  %82 = vmatpush1.bf16.msra.mxu0 0
  %83 = vmatprep.mubr.bf16.mxu0 0
  %84 = vmatmul.mubr.bf16.gmra.mrb[0].mxu0 %v49
  %v85 = vpop.f32.mrb[0].mxu0
  %v86 = vadd.f32 0.0, %v85
  %v87 = vpop.f32.mrb[0].mxu0
  %v88 = vpop.f32.mrb[0].mxu0
  %v89 = vadd.f32 0.0, %v88
  %v90 = vpop.f32.mrb[0].mxu0
  %91 = vdwg.mxu0
  %v92 = vadd.f32 %v22, %v86
  %v93 = vadd.f32 %v23, %v89
  %vm94 = vcmask 523264
  %95 = vst.msk [vmem:[#allocation2] sm:$0xff] %vm94, %v92
  %96 = vst.msk [vmem:[#allocation2 + $0x8] sm:$0xff] %vm94, %v93
  // Predicated region
  $region18: #{bert_joint_forward.17} parent=0 // pred_check
    %p97 = pneg %p15
  $region19: #{bert_joint_forward.17} parent=0 // pred_check_branch
    %99 = sbr.rel (%p97) target = $region21
  $region20: #{bert_joint_forward.17} parent=0 // pred_region
    %v100 = vld [vmem:[#allocation2] sm:$0xff]
    %v101 = vld [vmem:[#allocation2 + $0x8] sm:$0xff]
    %v102 = vld [vmem:[%s2] sm:$0x1]
    %v104 = vlaneseq
    %v105 = vshrl.u32 %v104, 7
    %v106 = vsub.s32 0, %v105
    %v107 = vrot.slane %v102, %v106
    %v109 = vadd.f32 %v100, %v107
    %v110 = vadd.f32 %v101, %v107
    %v111 = vmul.f32 %v109, 0.5
    %v112 = vmul.f32 %v110, 0.5
    %v113 = vmul.f32 %v109, 0.044715
    %v114 = vmul.f32 %v110, 0.044715
    %v115 = vmul.f32 %v113, %v109
    %v116 = vmul.f32 %v114, %v110
    %v117 = vmul.f32 %v115, %v109
    %v118 = vmul.f32 %v116, %v110
    %v119 = vadd.f32 %v109, %v117
    %v120 = vadd.f32 %v110, %v118
    %v121 = vmul.f32 %v119, 0.7978846
    %v122 = vmul.f32 %v120, 0.7978846
    %v123 = vtanh.pop %v121
    %v124 = vtanh.pop %v122
    %v125 = vadd.f32 %v123, 1.0
    %v126 = vadd.f32 %v124, 1.0
    %v127 = vmul.f32 %v111, %v125
    %v128 = vmul.f32 %v112, %v126
    %v129 = vpack.c.bf16 %v128, %v127
    %v131 = vunpack.c.l.b16 %v129
    %v132 = vunpack.c.h.b16 %v129
    %v133 = vpack.c.b16 %v131, %v131
    %v134 = vpack.c.b16 %v132, %v132
    %vm137 = vcmask 519168
    %138 = vst.msk [vmem:[%s3] sm:$0xf] %vm137, %v133
    %139 = vst.msk [vmem:[%s3 + $0x4] sm:$0xf] %vm137, %v134
  $region21: #{bert_joint_forward.17} parent=0 // pred_fallthru
    _
  // Predicated region
  $region22: #{bert_joint_forward.17} parent=0 // pred_check
    _
  $region23: #{bert_joint_forward.17} parent=0 // pred_check_branch
    %141 = sbr.rel (0) target = $region25
  $region24: #{bert_joint_forward.17} parent=0 // pred_region
    _
  $region25: #{bert_joint_forward.17} parent=0 // pred_fallthru
    _
  // Predicated region
  $region26: #{bert_joint_forward.17} parent=0 // pred_check
    _
  $region27: #{bert_joint_forward.17} parent=0 // pred_check_branch
    %143 = sbr.rel (0) target = $region29
  $region28: #{bert_joint_forward.17} parent=0 // pred_region
    _
  $region29: #{bert_joint_forward.17} parent=0 // pred_fallthru
    _

// kernel: bert_joint_forward.18
$region0: #{bert_joint_forward.18}
  #allocation0 [shape = 'u32[]', space=smem, size = 0x4, offset = 0x4, fixed_abs, tag = 'smem constant byte address 0x4 - core index']
  #allocation1 [shape = 'u32[144,128]{1,0:T(1,128)}', space=vmem, size = 0x12000, scoped, tag = 'internal scratch']
  #allocation2 [shape = 'f32[16,32]{1,0:T(8,128)}', space=vmem, size = 0x2000, scoped, tag = 'scratch operand']
  %s0 = inlined_call_operand.vmem [shape: bf16[16,64], index: 0, kind: input, shape index: {}]
  %s1 = inlined_call_operand.vmem [shape: bf16[64,32], index: 1, kind: input, shape index: {}]
  %s2 = inlined_call_operand.vmem [shape: f32[1,32], index: 2, kind: input, shape index: {}]
  %s3 = inlined_call_operand.vmem [shape: bf16[16,32], index: 3, kind: input, shape index: {}]
  %s4 = inlined_call_operand.vmem [shape: f32[1,32], index: 4, kind: input, shape index: {}]
  %s5 = inlined_call_operand.vmem [shape: f32[1,32], index: 5, kind: input, shape index: {}]
  %s6 = inlined_call_operand.vmem [shape: bf16[16,32], index: 6, kind: output, shape index: {}]
  %s7 = sld [smem:[#allocation0]]
  $region42: #{bert_joint_forward.18} parent=0
    _
  %s9 = ssub.s32 1, %s7
  %s10 = scalar_select 0, %s9, %s7
  // Predicated region
  $region2: #{bert_joint_forward.18} parent=0 // pred_check
    _
  $region3: #{bert_joint_forward.18} parent=0 // pred_check_branch
    %12 = sbr.rel (0) target = $region5
  $region4: #{bert_joint_forward.18} parent=0 // pred_region
    _
  $region5: #{bert_joint_forward.18} parent=0 // pred_fallthru
    _
  // Predicated region
  $region6: #{bert_joint_forward.18} parent=0 // pred_check
    _
  $region7: #{bert_joint_forward.18} parent=0 // pred_check_branch
    %14 = sbr.rel (0) target = $region9
  $region8: #{bert_joint_forward.18} parent=0 // pred_region
    _
  $region9: #{bert_joint_forward.18} parent=0 // pred_fallthru
    _
  // Predicated region
  $region10: #{bert_joint_forward.18} parent=0 // pred_check
    _
  $region11: #{bert_joint_forward.18} parent=0 // pred_check_branch
    %16 = sbr.rel (0) target = $region13
  $region12: #{bert_joint_forward.18} parent=0 // pred_region
    _
  $region13: #{bert_joint_forward.18} parent=0 // pred_fallthru
    _
  // Predicated region
  $region14: #{bert_joint_forward.18} parent=0 // pred_check
    _
  $region15: #{bert_joint_forward.18} parent=0 // pred_check_branch
    %18 = sbr.rel (0) target = $region17
  $region16: #{bert_joint_forward.18} parent=0 // pred_region
    _
  $region17: #{bert_joint_forward.18} parent=0 // pred_fallthru
    _
  // Predicated region
  $region18: #{bert_joint_forward.18} parent=0 // pred_check
    _
  $region19: #{bert_joint_forward.18} parent=0 // pred_check_branch
    %20 = sbr.rel (0) target = $region21
  $region20: #{bert_joint_forward.18} parent=0 // pred_region
    _
  $region21: #{bert_joint_forward.18} parent=0 // pred_fallthru
    _
  // Predicated region
  $region22: #{bert_joint_forward.18} parent=0 // pred_check
    _
  $region23: #{bert_joint_forward.18} parent=0 // pred_check_branch
    %22 = sbr.rel (0) target = $region25
  $region24: #{bert_joint_forward.18} parent=0 // pred_region
    _
  $region25: #{bert_joint_forward.18} parent=0 // pred_fallthru
    _
  %p24 = scmp.eq.s32.totalorder 0, 0
  // Predicated region
  $region26: #{bert_joint_forward.18} parent=0 // pred_check
    %p25 = pneg %p24
  $region27: #{bert_joint_forward.18} parent=0 // pred_check_branch
    %27 = sbr.rel (%p25) target = $region29
  $region28: #{bert_joint_forward.18} parent=0 // pred_region
    %vm28 = vcmask 261120
    %29 = vst.msk [vmem:[#allocation2] sm:$0xff] %vm28, 0.0
    %30 = vst.msk [vmem:[#allocation2 + $0x8] sm:$0xff] %vm28, 0.0
  $region29: #{bert_joint_forward.18} parent=0 // pred_fallthru
    _
  %v31 = vld [vmem:[#allocation2] sm:$0xff]
  %v32 = vld [vmem:[#allocation2 + $0x8] sm:$0xff]
  %v33 = vld [vmem:[%s0] sm:$0xf]
  %v34 = vld [vmem:[%s0 + $0x4] sm:$0xf]
  %v35 = vld [vmem:[%s1] sm:$0xf]
  %v36 = vld [vmem:[%s1 + $0x4] sm:$0xf]
  %v37 = vld [vmem:[%s1 + $0x8] sm:$0xf]
  %v38 = vld [vmem:[%s1 + $0xc] sm:$0xf]
  %v39 = vld [vmem:[%s1 + $0x10] sm:$0xf]
  %v40 = vld [vmem:[%s1 + $0x14] sm:$0xf]
  %v41 = vld [vmem:[%s1 + $0x18] sm:$0xf]
  %v42 = vld [vmem:[%s1 + $0x1c] sm:$0xf]
  %v45 = vunpack.c.l.b16 %v33
  %v46 = vunpack.c.l.b16 %v34
  %v47 = vpack.c.b16 %v46, %v45
  %v56 = vunpack.c.l.b16 %v35
  %v57 = vunpack.c.l.b16 %v36
  %v58 = vunpack.c.l.b16 %v37
  %v59 = vunpack.c.l.b16 %v38
  %v60 = vunpack.c.l.b16 %v39
  %v61 = vunpack.c.l.b16 %v40
  %v62 = vunpack.c.l.b16 %v41
  %v63 = vunpack.c.l.b16 %v42
  %v64 = vpack.c.b16 %v57, %v56
  %v65 = vpack.c.b16 %v59, %v58
  %v66 = vpack.c.b16 %v61, %v60
  %v67 = vpack.c.b16 %v63, %v62
  %vm72 = vcmask 523264
  %v74 = vsel %vm72, %v47, 0
  %76 = vmatprep.subr.bf16.mxu0 0
  %77 = vmatpush1.bf16.msra.mxu0 %v64
  %78 = vmatprep.subr.bf16.mxu0 0
  %79 = vmatpush1.bf16.msra.mxu0 %v65
  %80 = vmatprep.subr.bf16.mxu0 0
  %81 = vmatpush1.bf16.msra.mxu0 %v66
  %82 = vmatprep.subr.bf16.mxu0 0
  %83 = vmatpush1.bf16.msra.mxu0 %v67
  %84 = vmatprep.subr.bf16.mxu0 0
  %85 = vmatpush1.bf16.msra.mxu0 0
  %86 = vmatprep.subr.bf16.mxu0 0
  %87 = vmatpush1.bf16.msra.mxu0 0
  %88 = vmatprep.subr.bf16.mxu0 0
  %89 = vmatpush1.bf16.msra.mxu0 0
  %90 = vmatprep.subr.bf16.mxu0 0
  %91 = vmatpush1.bf16.msra.mxu0 0
  %92 = vmatprep.subr.bf16.mxu0 0
  %93 = vmatpush1.bf16.msra.mxu0 0
  %94 = vmatprep.subr.bf16.mxu0 0
  %95 = vmatpush1.bf16.msra.mxu0 0
  %96 = vmatprep.subr.bf16.mxu0 0
  %97 = vmatpush1.bf16.msra.mxu0 0
  %98 = vmatprep.subr.bf16.mxu0 0
  %99 = vmatpush1.bf16.msra.mxu0 0
  %100 = vmatprep.subr.bf16.mxu0 0
  %101 = vmatpush1.bf16.msra.mxu0 0
  %102 = vmatprep.subr.bf16.mxu0 0
  %103 = vmatpush1.bf16.msra.mxu0 0
  %104 = vmatprep.subr.bf16.mxu0 0
  %105 = vmatpush1.bf16.msra.mxu0 0
  %106 = vmatprep.subr.bf16.mxu0 0
  %107 = vmatpush1.bf16.msra.mxu0 0
  %108 = vmatprep.mubr.bf16.mxu0 0
  %109 = vmatmul.mubr.bf16.gmra.mrb[0].mxu0 %v74
  %v110 = vpop.f32.mrb[0].mxu0
  %v111 = vadd.f32 0.0, %v110
  %v112 = vpop.f32.mrb[0].mxu0
  %v113 = vpop.f32.mrb[0].mxu0
  %v114 = vadd.f32 0.0, %v113
  %v115 = vpop.f32.mrb[0].mxu0
  %116 = vdwg.mxu0
  %v117 = vadd.f32 %v31, %v111
  %v118 = vadd.f32 %v32, %v114
  %vm119 = vcmask 261120
  %120 = vst.msk [vmem:[#allocation2] sm:$0xff] %vm119, %v117
  %121 = vst.msk [vmem:[#allocation2 + $0x8] sm:$0xff] %vm119, %v118
  // Predicated region
  $region30: #{bert_joint_forward.18} parent=0 // pred_check
    %p122 = pneg %p24
  $region31: #{bert_joint_forward.18} parent=0 // pred_check_branch
    %124 = sbr.rel (%p122) target = $region33
  $region32: #{bert_joint_forward.18} parent=0 // pred_region
    %v125 = vld [vmem:[#allocation2] sm:$0xff]
    %v126 = vld [vmem:[#allocation2 + $0x8] sm:$0xff]
    %v127 = vld [vmem:[%s2] sm:$0x1]
    %v129 = vlaneseq
    %v130 = vshrl.u32 %v129, 7
    %v131 = vsub.s32 0, %v130
    %v132 = vrot.slane %v127, %v131
    %v134 = vadd.f32 %v125, %v132
    %v135 = vadd.f32 %v126, %v132
    %v136 = vld [vmem:[%s3] sm:$0xf]
    %v137 = vld [vmem:[%s3 + $0x4] sm:$0xf]
    %v138 = vunpack.c.l.bf16 %v136
    %v139 = vunpack.c.l.bf16 %v137
    %v140 = vadd.f32 %v134, %v138
    %v141 = vadd.f32 %v135, %v139
    %v142 = vsel %vm119, %v140, 0.0
    %143 = vadd.xlane.f32.xlu0 %v142
    %v144 = vpop.xlane.xlu0 %143
    %v145 = vsel %vm119, %v141, 0.0
    %146 = vadd.xlane.f32.xlu0 %v145
    %v147 = vpop.xlane.xlu0 %146
    %v148 = vrcp.pop 32.0
    %v149 = vmul.f32 %v144, %v148
    %v150 = vmul.f32 %v147, %v148
    %v151 = vsub.f32 %v140, %v149
    %v152 = vsub.f32 %v141, %v150
    %v153 = vmul.f32 %v151, %v151
    %v154 = vmul.f32 %v152, %v152
    %v155 = vsel %vm119, %v153, 0.0
    %156 = vadd.xlane.f32.xlu0 %v155
    %v157 = vpop.xlane.xlu0 %156
    %v158 = vsel %vm119, %v154, 0.0
    %159 = vadd.xlane.f32.xlu0 %v158
    %v160 = vpop.xlane.xlu0 %159
    %v161 = vmul.f32 %v157, %v148
    %v162 = vmul.f32 %v160, %v148
    %v163 = vadd.f32 %v161, 1e-12
    %v164 = vadd.f32 %v162, 1e-12
    %v165 = vrsqrt.pop %v163
    %v166 = vrsqrt.pop %v164
    %v167 = vmul.f32 %v151, %v165
    %v168 = vmul.f32 %v152, %v166
    %v169 = vld [vmem:[%s4] sm:$0x1]
    %v171 = vlaneseq
    %v172 = vshrl.u32 %v171, 7
    %v173 = vsub.s32 0, %v172
    %v174 = vrot.slane %v169, %v173
    %v176 = vmul.f32 %v167, %v174
    %v177 = vmul.f32 %v168, %v174
    %v178 = vld [vmem:[%s5] sm:$0x1]
    %v180 = vlaneseq
    %v181 = vshrl.u32 %v180, 7
    %v182 = vsub.s32 0, %v181
    %v183 = vrot.slane %v178, %v182
    %v185 = vadd.f32 %v176, %v183
    %v186 = vadd.f32 %v177, %v183
    %v187 = vpack.c.bf16 %v186, %v185
    %v189 = vunpack.c.l.b16 %v187
    %v190 = vunpack.c.h.b16 %v187
    %v191 = vpack.c.b16 %v189, %v189
    %v192 = vpack.c.b16 %v190, %v190
    %vm195 = vcmask 257024
    %196 = vst.msk [vmem:[%s6] sm:$0xf] %vm195, %v191
    %197 = vst.msk [vmem:[%s6 + $0x4] sm:$0xf] %vm195, %v192
  $region33: #{bert_joint_forward.18} parent=0 // pred_fallthru
    _
  // Predicated region
  $region34: #{bert_joint_forward.18} parent=0 // pred_check
    _
  $region35: #{bert_joint_forward.18} parent=0 // pred_check_branch
    %199 = sbr.rel (0) target = $region37
  $region36: #{bert_joint_forward.18} parent=0 // pred_region
    _
  $region37: #{bert_joint_forward.18} parent=0 // pred_fallthru
    _
  // Predicated region
  $region38: #{bert_joint_forward.18} parent=0 // pred_check
    _
  $region39: #{bert_joint_forward.18} parent=0 // pred_check_branch
    %201 = sbr.rel (0) target = $region41
  $region40: #{bert_joint_forward.18} parent=0 // pred_region
    _
  $region41: #{bert_joint_forward.18} parent=0 // pred_fallthru
    _

// kernel: bert_joint_forward.24
$region0: #{bert_joint_forward.24}
  #allocation0 [shape = 'u32[]', space=smem, size = 0x4, offset = 0x4, fixed_abs, tag = 'smem constant byte address 0x4 - core index']
  #allocation1 [shape = 'u32[144,128]{1,0:T(1,128)}', space=vmem, size = 0x12000, scoped, tag = 'internal scratch']
  %s0 = inlined_call_operand.vmem [shape: bf16[2,32], index: 0, kind: input, shape index: {}]
  %s1 = inlined_call_operand.vmem [shape: bf16[32,32], index: 1, kind: input, shape index: {}]
  %s2 = inlined_call_operand.vmem [shape: f32[1,32], index: 2, kind: input, shape index: {}]
  %s3 = inlined_call_operand.vmem [shape: bf16[32,128], index: 3, kind: input, shape index: {}]
  %s4 = inlined_call_operand.vmem [shape: f32[1,128], index: 4, kind: input, shape index: {}]
  %s5 = inlined_call_operand.hbm [shape: f32[2,128], index: 5, kind: output, shape index: {}]
  %s6 = sld [smem:[#allocation0]]
  $region30: #{bert_joint_forward.24} parent=0
    _
  %s8 = ssub.s32 1, %s6
  %s9 = scalar_select 0, %s8, %s6
  $region1: #{bert_joint_forward.24} parent=0
    #allocation2 [shape = 'u8[1024]{0}', space=vmem, size = 0x400, scoped, tag = 'output window, operand 0, single buffered']
    #allocation3 [shape = 's32[1]{0}', space=sflag, size = 0x4, scoped, tag = 'scoped memory for bert_joint_forward.24']
    %10 = vsyncpa [#allocation3], 0
    // Predicated region
    $region2: #{bert_joint_forward.24} parent=1 // pred_check
      _
    $region3: #{bert_joint_forward.24} parent=1 // pred_check_branch
      %12 = sbr.rel (0) target = $region5
    $region4: #{bert_joint_forward.24} parent=1 // pred_region
      _
    $region5: #{bert_joint_forward.24} parent=1 // pred_fallthru
      _
    // Predicated region
    $region6: #{bert_joint_forward.24} parent=1 // pred_check
      _
    $region7: #{bert_joint_forward.24} parent=1 // pred_check_branch
      %14 = sbr.rel (0) target = $region9
    $region8: #{bert_joint_forward.24} parent=1 // pred_region
      _
    $region9: #{bert_joint_forward.24} parent=1 // pred_fallthru
      _
    // Predicated region
    $region10: #{bert_joint_forward.24} parent=1 // pred_check
      _
    $region11: #{bert_joint_forward.24} parent=1 // pred_check_branch
      %16 = sbr.rel (0) target = $region13
    $region12: #{bert_joint_forward.24} parent=1 // pred_region
      _
    $region13: #{bert_joint_forward.24} parent=1 // pred_fallthru
      _
    // Predicated region
    $region14: #{bert_joint_forward.24} parent=1 // pred_check
      _
    $region15: #{bert_joint_forward.24} parent=1 // pred_check_branch
      %18 = sbr.rel (0) target = $region17
    $region16: #{bert_joint_forward.24} parent=1 // pred_region
      _
    $region17: #{bert_joint_forward.24} parent=1 // pred_fallthru
      _
    // Predicated region
    $region18: #{bert_joint_forward.24} parent=1 // pred_check
      _
    $region19: #{bert_joint_forward.24} parent=1 // pred_check_branch
      %20 = sbr.rel (0) target = $region21
    $region20: #{bert_joint_forward.24} parent=1 // pred_region
      _
    $region21: #{bert_joint_forward.24} parent=1 // pred_fallthru
      _
    %v22 = vld [vmem:[%s0] sm:$0x1]
    %v23 = vld [vmem:[%s1] sm:$0xf]
    %v24 = vld [vmem:[%s1 + $0x4] sm:$0xf]
    %v25 = vld [vmem:[%s1 + $0x8] sm:$0xf]
    %v26 = vld [vmem:[%s1 + $0xc] sm:$0xf]
    %v27 = vld [vmem:[%s2] sm:$0x1]
    %v29 = vlaneseq
    %v30 = vshrl.u32 %v29, 7
    %v31 = vsub.s32 0, %v30
    %v32 = vrot.slane %v27, %v31
    %v38 = vunpack.c.l.b16 %v23
    %v39 = vunpack.c.l.b16 %v24
    %v40 = vunpack.c.l.b16 %v25
    %v41 = vunpack.c.l.b16 %v26
    %v42 = vpack.c.b16 %v39, %v38
    %v43 = vpack.c.b16 %v41, %v40
    %vm46 = vcmask 261120
    %v48 = vsel %vm46, %v22, 0
    %50 = vmatprep.subr.bf16.mxu0 0
    %51 = vmatpush1.bf16.msra.mxu0 %v42
    %52 = vmatprep.subr.bf16.mxu0 0
    %53 = vmatpush1.bf16.msra.mxu0 %v43
    %54 = vmatprep.subr.bf16.mxu0 0
    %55 = vmatpush1.bf16.msra.mxu0 0
    %56 = vmatprep.subr.bf16.mxu0 0
    %57 = vmatpush1.bf16.msra.mxu0 0
    %58 = vmatprep.subr.bf16.mxu0 0
    %59 = vmatpush1.bf16.msra.mxu0 0
    %60 = vmatprep.subr.bf16.mxu0 0
    %61 = vmatpush1.bf16.msra.mxu0 0
    %62 = vmatprep.subr.bf16.mxu0 0
    %63 = vmatpush1.bf16.msra.mxu0 0
    %64 = vmatprep.subr.bf16.mxu0 0
    %65 = vmatpush1.bf16.msra.mxu0 0
    %66 = vmatprep.subr.bf16.mxu0 0
    %67 = vmatpush1.bf16.msra.mxu0 0
    %68 = vmatprep.subr.bf16.mxu0 0
    %69 = vmatpush1.bf16.msra.mxu0 0
    %70 = vmatprep.subr.bf16.mxu0 0
    %71 = vmatpush1.bf16.msra.mxu0 0
    %72 = vmatprep.subr.bf16.mxu0 0
    %73 = vmatpush1.bf16.msra.mxu0 0
    %74 = vmatprep.subr.bf16.mxu0 0
    %75 = vmatpush1.bf16.msra.mxu0 0
    %76 = vmatprep.subr.bf16.mxu0 0
    %77 = vmatpush1.bf16.msra.mxu0 0
    %78 = vmatprep.subr.bf16.mxu0 0
    %79 = vmatpush1.bf16.msra.mxu0 0
    %80 = vmatprep.subr.bf16.mxu0 0
    %81 = vmatpush1.bf16.msra.mxu0 0
    %82 = vmatprep.mubr.bf16.mxu0 0
    %83 = vmatmul.mubr.bf16.gmra.mrb[0].mxu0 %v48
    %v84 = vpop.f32.mrb[0].mxu0
    %v85 = vadd.f32 %v32, %v84
    %v86 = vpop.f32.mrb[0].mxu0
    %v87 = vpop.f32.mrb[0].mxu0
    %v88 = vpop.f32.mrb[0].mxu0
    %89 = vdwg.mxu0
    %v90 = vtanh.pop %v85
    %v91 = vpack.c.bf16 %v90, %v90
    %v92 = vld [vmem:[%s3] sm:$0xf]
    %v93 = vld [vmem:[%s3 + $0x4] sm:$0xf]
    %v94 = vld [vmem:[%s3 + $0x8] sm:$0xf]
    %v95 = vld [vmem:[%s3 + $0xc] sm:$0xf]
    %v96 = vld [vmem:[%s4] sm:$0x1]
    %v98 = vlaneseq
    %v99 = vshrl.u32 %v98, 7
    %v100 = vsub.s32 0, %v99
    %v101 = vrot.slane %v96, %v100
    %v107 = vunpack.c.l.b16 %v92
    %v108 = vunpack.c.l.b16 %v93
    %v109 = vunpack.c.l.b16 %v94
    %v110 = vunpack.c.l.b16 %v95
    %v111 = vpack.c.b16 %v108, %v107
    %v112 = vpack.c.b16 %v110, %v109
    %v116 = vsel %vm46, %v91, 0
    %118 = vmatprep.subr.bf16.mxu0 0
    %119 = vmatpush1.bf16.msra.mxu0 %v111
    %120 = vmatprep.subr.bf16.mxu0 0
    %121 = vmatpush1.bf16.msra.mxu0 %v112
    %122 = vmatprep.subr.bf16.mxu0 0
    %123 = vmatpush1.bf16.msra.mxu0 0
    %124 = vmatprep.subr.bf16.mxu0 0
    %125 = vmatpush1.bf16.msra.mxu0 0
    %126 = vmatprep.subr.bf16.mxu0 0
    %127 = vmatpush1.bf16.msra.mxu0 0
    %128 = vmatprep.subr.bf16.mxu0 0
    %129 = vmatpush1.bf16.msra.mxu0 0
    %130 = vmatprep.subr.bf16.mxu0 0
    %131 = vmatpush1.bf16.msra.mxu0 0
    %132 = vmatprep.subr.bf16.mxu0 0
    %133 = vmatpush1.bf16.msra.mxu0 0
    %134 = vmatprep.subr.bf16.mxu0 0
    %135 = vmatpush1.bf16.msra.mxu0 0
    %136 = vmatprep.subr.bf16.mxu0 0
    %137 = vmatpush1.bf16.msra.mxu0 0
    %138 = vmatprep.subr.bf16.mxu0 0
    %139 = vmatpush1.bf16.msra.mxu0 0
    %140 = vmatprep.subr.bf16.mxu0 0
    %141 = vmatpush1.bf16.msra.mxu0 0
    %142 = vmatprep.subr.bf16.mxu0 0
    %143 = vmatpush1.bf16.msra.mxu0 0
    %144 = vmatprep.subr.bf16.mxu0 0
    %145 = vmatpush1.bf16.msra.mxu0 0
    %146 = vmatprep.subr.bf16.mxu0 0
    %147 = vmatpush1.bf16.msra.mxu0 0
    %148 = vmatprep.subr.bf16.mxu0 0
    %149 = vmatpush1.bf16.msra.mxu0 0
    %150 = vmatprep.mubr.bf16.mxu0 0
    %151 = vmatmul.mubr.bf16.gmra.mrb[0].mxu0 %v116
    %v152 = vpop.f32.mrb[0].mxu0
    %v153 = vadd.f32 %v101, %v152
    %v154 = vpop.f32.mrb[0].mxu0
    %v155 = vpop.f32.mrb[0].mxu0
    %v156 = vpop.f32.mrb[0].mxu0
    %157 = vdwg.mxu0
    %158 = vst [vmem:[#allocation2] sm:$0x3] %v153
    // Predicated region
    $region22: #{bert_joint_forward.24} parent=1 // pred_check
      _
    $region23: #{bert_joint_forward.24} parent=1 // pred_check_branch
      %160 = sbr.rel (0) target = $region25
    $region24: #{bert_joint_forward.24} parent=1 // pred_region
      %s162 = ssub.s32 32, 32
      %163 = vsyncadd [#allocation3], %s162
      %s165 = sshll.u32 [#allocation2], 4
      %s166 = int_to_ptr.vmem [resolvable:$true] %s165
      %168 = dma.vmem_to_hbm [thread:$0]  %s166, 32, %s5, [#allocation3]
    $region25: #{bert_joint_forward.24} parent=1 // pred_fallthru
      _
    // Predicated region
    $region26: #{bert_joint_forward.24} parent=1 // pred_check
      _
    $region27: #{bert_joint_forward.24} parent=1 // pred_check_branch
      %170 = sbr.rel (0) target = $region29
    $region28: #{bert_joint_forward.24} parent=1 // pred_region
      %171 = dma.done [#allocation3], 32
    $region29: #{bert_joint_forward.24} parent=1 // pred_fallthru
      _
    %172 = vsyncpa [#allocation3], 1

</llo_original>
